<compile_context>
chip_gen: v7x
topology: tpu7x:2x2x1
jax: 0.10.0
libtpu: 0.0.40
codegen_flags: <defaults>
</compile_context>

<pallas_src>
import functools

import jax
import jax.numpy as jnp
import numpy as np
from jax.experimental import pallas as pl
from jax.experimental.pallas import tpu as pltpu


def _round_up(x, m):
    return (x + m - 1) // m * m


def fused_sideview_kernel(x_ref, m_ref, w1_ref, b1_ref, w2_ref, b2_ref, o_ref,
                          src1_ref, pat1_ref, src2_ref, pat2_ref,
                          *, H, W, Cin, Cin_pad, Cf, Cf_pad, Cout):
    HW = H * W
    PAD = W + 1   # halo width along the flattened-spatial (lane) axis

    # Column masks shared by both convs: a +-1 x-shift that leaves the image is zeroed.
    col = jax.lax.broadcasted_iota(jnp.int32, (1, HW), 1) % W
    not_left = col != 0            # tap dx = -1 invalid where x == 0
    not_right = col != (W - 1)     # tap dx = +1 invalid where x == W-1

    def im2col(src_ref, interior, pat_ref, C, C_pad):
        """Place `interior` (C, HW) into the halo-padded scratch, then build the
        (9*C_pad, HW) im2col slab with 9 lane-shifted copies (relayout paid once per tap)."""
        hwp = src_ref.shape[1]
        zcol = jnp.zeros((C_pad, PAD), jnp.float32)
        src_ref[:, pl.ds(0, PAD)] = zcol                  # left halo  (rows above the image)
        src_ref[:, pl.ds(PAD + HW, PAD)] = zcol           # right halo (rows below the image)
        if C_pad > C:                                     # channel-pad rows must be exact zeros
            src_ref[pl.ds(C, C_pad - C), :] = jnp.zeros((C_pad - C, hwp), jnp.float32)
        src_ref[pl.ds(0, C), pl.ds(PAD, HW)] = interior   # sublane-aligned interior store

        for dy in range(3):
            for dx in range(3):
                off = PAD + (dy - 1) * W + (dx - 1)
                tap = src_ref[:, pl.ds(off, HW)]          # (C_pad, HW), lane-shifted read
                if dx == 0:
                    tap = jnp.where(not_left, tap, 0.0)
                elif dx == 2:
                    tap = jnp.where(not_right, tap, 0.0)
                pat_ref[pl.ds((dy * 3 + dx) * C_pad, C_pad), :] = tap   # aligned slab store

    # ---- conv1: mask applied once, single MXU matmul, bias + ReLU, stays in VMEM ----
    xm = x_ref[0] * m_ref[0]                                           # (Cin, HW)
    im2col(src1_ref, xm, pat1_ref, Cin, Cin_pad)
    h1 = jnp.dot(w1_ref[...], pat1_ref[...], preferred_element_type=jnp.float32)
    h1 = jnp.maximum(h1 + b1_ref[...], 0.0)                            # (Cf, HW)

    # ---- conv2: weights-as-LHS -> output is natively (Cout, HW), no transpose ----
    im2col(src2_ref, h1, pat2_ref, Cf, Cf_pad)
    acc2 = jnp.dot(w2_ref[...], pat2_ref[...], preferred_element_type=jnp.float32)
    z = acc2[0:Cout, :] + b2_ref[...]                                  # (Cout, HW)
    o_ref[0] = 1.0 / (1.0 + jnp.exp(-z))                               # lane-dense store


def side_view_feature_extractor(x_nchw, mask_nchw, w1, b1, w2, b2):
    """Forward pass matching the PyTorch module. Inputs NCHW, output NCHW.

    w1: (3, 3, Cin, Cf) HWIO, b1: (1, Cf); w2: (3, 3, Cf, Cout) HWIO, b2: (1, Cout).
    """
    B, Cin, H, W = x_nchw.shape
    Cf = w1.shape[3]
    Cout = w2.shape[3]
    HW = H * W
    PAD = W + 1
    Cin_pad = _round_up(Cin, 8)
    Cf_pad = _round_up(Cf, 8)
    Cout_pad = _round_up(Cout, 8)

    # NCHW is the kernel-native layout (channels on sublanes, flattened spatial on lanes):
    # pure reshapes only, no transposes, no extra HBM round trip.
    x = x_nchw.reshape(B, Cin, HW).astype(jnp.float32)
    m = mask_nchw.reshape(B, 1, HW).astype(jnp.float32)

    # Weight slabs (HWIO -> LHS of the transposed matmuls); channel-pad columns are zero so
    # the zeroed patch pad rows contribute nothing.  conv2 LHS padded to 8 rows (one sublane
    # group), not 128 lanes.
    w1_slab = jnp.transpose(
        jnp.pad(w1.astype(jnp.float32).reshape(9, Cin, Cf),
                ((0, 0), (0, Cin_pad - Cin), (0, 0))).reshape(9 * Cin_pad, Cf))
    w2_slab = jnp.pad(
        jnp.transpose(
            jnp.pad(w2.astype(jnp.float32).reshape(9, Cf, Cout),
                    ((0, 0), (0, Cf_pad - Cf), (0, 0))).reshape(9 * Cf_pad, Cout)),
        ((0, Cout_pad - Cout), (0, 0)))
    b1_col = b1.reshape(Cf, 1).astype(jnp.float32)
    b2_col = b2.reshape(Cout, 1).astype(jnp.float32)

    out = pl.pallas_call(
        functools.partial(fused_sideview_kernel, H=H, W=W, Cin=Cin, Cin_pad=Cin_pad,
                          Cf=Cf, Cf_pad=Cf_pad, Cout=Cout),
        out_shape=jax.ShapeDtypeStruct((B, Cout, HW), jnp.float32),
        grid_spec=pltpu.PrefetchScalarGridSpec(
            num_scalar_prefetch=0,
            grid=(B,),
            in_specs=[
                pl.BlockSpec((1, Cin, HW), lambda b: (b, 0, 0)),
                pl.BlockSpec((1, 1, HW), lambda b: (b, 0, 0)),
                pl.BlockSpec((Cf, 9 * Cin_pad), lambda b: (0, 0)),
                pl.BlockSpec((Cf, 1), lambda b: (0, 0)),
                pl.BlockSpec((Cout_pad, 9 * Cf_pad), lambda b: (0, 0)),
                pl.BlockSpec((Cout, 1), lambda b: (0, 0)),
            ],
            out_specs=pl.BlockSpec((1, Cout, HW), lambda b: (b, 0, 0)),
            scratch_shapes=[
                pltpu.VMEM((Cin_pad, HW + 2 * PAD), jnp.float32),   # halo-padded masked input
                pltpu.VMEM((9 * Cin_pad, HW), jnp.float32),         # conv1 im2col slab
                pltpu.VMEM((Cf_pad, HW + 2 * PAD), jnp.float32),    # halo-padded conv1 output
                pltpu.VMEM((9 * Cf_pad, HW), jnp.float32),          # conv2 im2col slab
            ],
        ),
        compiler_params=pltpu.CompilerParams(dimension_semantics=("parallel",)),
    )(x, m, w1_slab, b1_col, w2_slab, b2_col)

    return out.reshape(B, Cout, H, W)    # lane-dense kernel output -> NCHW is a pure reshape


def reference_forward(x_nchw, mask_nchw, w1, b1, w2, b2):
    """Plain-JAX reference (same math as the PyTorch module)."""
    x = jnp.transpose(x_nchw, (0, 2, 3, 1)).astype(jnp.float32)
    m = jnp.transpose(mask_nchw, (0, 2, 3, 1)).astype(jnp.float32)
    xm = x * m
    dn = ("NHWC", "HWIO", "NHWC")
    y = jax.lax.conv_general_dilated(xm, w1, (1, 1), "SAME", dimension_numbers=dn)
    y = jnp.maximum(y + b1.reshape(1, 1, 1, -1), 0.0)
    y = jax.lax.conv_general_dilated(y, w2, (1, 1), "SAME", dimension_numbers=dn)
    y = 1.0 / (1.0 + jnp.exp(-(y + b2.reshape(1, 1, 1, -1))))
    return jnp.transpose(y, (0, 3, 1, 2))


if __name__ == "__main__":
    B, Cin, H, W = 2, 4, 16, 16
    Cf, Cout = 32, 3

    key = jax.random.PRNGKey(0)
    k1, k2, k3, k4, k5, k6 = jax.random.split(key, 6)

    # Deterministic synthetic parameters (HWIO weights, (1, C) biases).
    w1 = jax.random.normal(k1, (3, 3, Cin, Cf), jnp.float32) * 0.1
    b1 = jax.random.normal(k2, (1, Cf), jnp.float32) * 0.1
    w2 = jax.random.normal(k3, (3, 3, Cf, Cout), jnp.float32) * 0.1
    b2 = jax.random.normal(k4, (1, Cout), jnp.float32) * 0.1

    x = jax.random.normal(k5, (B, Cin, H, W), jnp.float32)
    mask = (jax.random.uniform(k6, (B, 1, H, W)) > 0.5).astype(jnp.float32)

    fwd = jax.jit(side_view_feature_extractor)
    out = jax.block_until_ready(fwd(x, mask, w1, b1, w2, b2))
    ref = jax.block_until_ready(reference_forward(x, mask, w1, b1, w2, b2))

    assert out.shape == (B, Cout, H, W), out.shape
    np.testing.assert_allclose(np.asarray(out), np.asarray(ref), rtol=1e-4, atol=1e-4)
    print("KERNEL_OK")
</pallas_src>

<mosaic_0001>
module attributes {stable_mosaic.version = 11 : i64} {
  func.func @fused_sideview_kernel(%arg0: i32, %arg1: memref<1x4x256xf32, #tpu.memory_space<vmem>>, %arg2: memref<1x1x256xf32, #tpu.memory_space<vmem>>, %arg3: memref<32x72xf32, #tpu.memory_space<vmem>>, %arg4: memref<32x1xf32, #tpu.memory_space<vmem>>, %arg5: memref<8x288xf32, #tpu.memory_space<vmem>>, %arg6: memref<3x1xf32, #tpu.memory_space<vmem>>, %arg7: memref<1x3x256xf32, #tpu.memory_space<vmem>>, %arg8: memref<8x290xf32, #tpu.memory_space<vmem>>, %arg9: memref<72x256xf32, #tpu.memory_space<vmem>>, %arg10: memref<32x290xf32, #tpu.memory_space<vmem>>, %arg11: memref<288x256xf32, #tpu.memory_space<vmem>>) attributes {dimension_semantics = [#tpu.dimension_semantics<parallel>], iteration_bounds = array<i64: 2>, scalar_prefetch = 0 : i64, scratch_operands = 4 : i64, tpu.core_type = #tpu.core_type<tc>, window_params = [{transform_indices = @transform_0, window_bounds = array<i64: 1, 4, 256>}, {transform_indices = @transform_1, window_bounds = array<i64: 1, 1, 256>}, {pipeline_mode = #tpu.pipeline_mode<synchronous>, transform_indices = @transform_2, window_bounds = array<i64: 32, 72>}, {pipeline_mode = #tpu.pipeline_mode<synchronous>, transform_indices = @transform_3, window_bounds = array<i64: 32, 1>}, {pipeline_mode = #tpu.pipeline_mode<synchronous>, transform_indices = @transform_4, window_bounds = array<i64: 8, 288>}, {pipeline_mode = #tpu.pipeline_mode<synchronous>, transform_indices = @transform_5, window_bounds = array<i64: 3, 1>}, {transform_indices = @transform_6, window_bounds = array<i64: 1, 3, 256>}]} {
    %0 = tpu.iota {dimensions = array<i32: 1>} : vector<1x256xi32>
    %c16_i32 = arith.constant 16 : i32
    %c0_i32 = arith.constant 0 : i32
    %1 = arith.cmpi eq, %c16_i32, %c0_i32 : i32
    %c1_i32 = arith.constant 1 : i32
    %2 = arith.select %1, %c1_i32, %c16_i32 : i32
    %3 = vector.broadcast %2 : i32 to vector<1x256xi32>
    %4 = arith.remsi %0, %3 : vector<1x256xi32>
    %c0_i32_0 = arith.constant 0 : i32
    %5 = vector.broadcast %c0_i32_0 : i32 to vector<1x256xi32>
    %6 = arith.cmpi ne, %4, %5 : vector<1x256xi32>
    %c0_i32_1 = arith.constant 0 : i32
    %7 = vector.broadcast %c0_i32_1 : i32 to vector<1x256xi32>
    %8 = arith.cmpi slt, %4, %7 : vector<1x256xi32>
    %c0_i32_2 = arith.constant 0 : i32
    %9 = arith.cmpi slt, %2, %c0_i32_2 : i32
    %10 = vector.broadcast %9 : i1 to vector<1x256xi1>
    %11 = vector.broadcast %10 : vector<1x256xi1> to vector<1x256xi1>
    %12 = arith.xori %8, %11 : vector<1x256xi1>
    %13 = arith.andi %12, %6 : vector<1x256xi1>
    %14 = vector.broadcast %2 : i32 to vector<1x256xi32>
    %15 = arith.addi %4, %14 : vector<1x256xi32>
    %16 = arith.select %13, %15, %4 : vector<1x256xi1>, vector<1x256xi32>
    %c0_i32_3 = arith.constant 0 : i32
    %17 = vector.broadcast %c0_i32_3 : i32 to vector<1x256xi32>
    %18 = arith.cmpi ne, %16, %17 : vector<1x256xi32>
    %c15_i32 = arith.constant 15 : i32
    %19 = vector.broadcast %c15_i32 : i32 to vector<1x256xi32>
    %20 = arith.cmpi ne, %16, %19 : vector<1x256xi32>
    %c0 = arith.constant 0 : index
    %c0_4 = arith.constant 0 : index
    %c0_5 = arith.constant 0 : index
    %21 = vector.load %arg1[%c0, %c0_4, %c0_5] : memref<1x4x256xf32, #tpu.memory_space<vmem>>, vector<1x4x256xf32>
    %22 = vector.shape_cast %21 : vector<1x4x256xf32> to vector<4x256xf32>
    %c0_6 = arith.constant 0 : index
    %c0_7 = arith.constant 0 : index
    %c0_8 = arith.constant 0 : index
    %23 = vector.load %arg2[%c0_6, %c0_7, %c0_8] : memref<1x1x256xf32, #tpu.memory_space<vmem>>, vector<1x1x256xf32>
    %24 = vector.shape_cast %23 : vector<1x1x256xf32> to vector<1x256xf32>
    %25 = vector.broadcast %24 : vector<1x256xf32> to vector<4x256xf32>
    %26 = arith.mulf %22, %25 : vector<4x256xf32>
    %cst = arith.constant 0.000000e+00 : f32
    %27 = vector.broadcast %cst : f32 to vector<8x17xf32>
    %c0_9 = arith.constant 0 : index
    %c0_10 = arith.constant 0 : index
    %28 = vector.load %arg8[%c0_9, %c0_10] : memref<8x290xf32, #tpu.memory_space<vmem>>, vector<8x17xf32>
    tpu.vector_store %arg8[%c0_9, %c0_10], %27 {strides = array<i32>} : memref<8x290xf32, #tpu.memory_space<vmem>>, vector<8x17xf32>,
    %c0_11 = arith.constant 0 : index
    %c273 = arith.constant 273 : index
    %29 = vector.load %arg8[%c0_11, %c273] : memref<8x290xf32, #tpu.memory_space<vmem>>, vector<8x17xf32>
    tpu.vector_store %arg8[%c0_11, %c273], %27 {strides = array<i32>} : memref<8x290xf32, #tpu.memory_space<vmem>>, vector<8x17xf32>,
    %cst_12 = arith.constant 0.000000e+00 : f32
    %30 = vector.broadcast %cst_12 : f32 to vector<4x290xf32>
    %c4 = arith.constant 4 : index
    %c0_13 = arith.constant 0 : index
    %31 = vector.load %arg8[%c4, %c0_13] : memref<8x290xf32, #tpu.memory_space<vmem>>, vector<4x290xf32>
    tpu.vector_store %arg8[%c4, %c0_13], %30 {strides = array<i32>} : memref<8x290xf32, #tpu.memory_space<vmem>>, vector<4x290xf32>,
    %c0_14 = arith.constant 0 : index
    %c17 = arith.constant 17 : index
    %32 = vector.load %arg8[%c0_14, %c17] : memref<8x290xf32, #tpu.memory_space<vmem>>, vector<4x256xf32>
    tpu.vector_store %arg8[%c0_14, %c17], %26 {strides = array<i32>} : memref<8x290xf32, #tpu.memory_space<vmem>>, vector<4x256xf32>,
    %c0_15 = arith.constant 0 : index
    %c0_16 = arith.constant 0 : index
    %33 = vector.load %arg8[%c0_15, %c0_16] : memref<8x290xf32, #tpu.memory_space<vmem>>, vector<8x256xf32>
    %cst_17 = arith.constant 0.000000e+00 : f32
    %34 = vector.shape_cast %18 : vector<1x256xi1> to vector<1x256xi1>
    %35 = vector.broadcast %34 : vector<1x256xi1> to vector<8x256xi1>
    %36 = vector.broadcast %cst_17 : f32 to vector<8x256xf32>
    %37 = arith.select %35, %33, %36 : vector<8x256xi1>, vector<8x256xf32>
    %c0_18 = arith.constant 0 : index
    %c0_19 = arith.constant 0 : index
    %38 = vector.load %arg9[%c0_18, %c0_19] : memref<72x256xf32, #tpu.memory_space<vmem>>, vector<8x256xf32>
    tpu.vector_store %arg9[%c0_18, %c0_19], %37 {strides = array<i32>} : memref<72x256xf32, #tpu.memory_space<vmem>>, vector<8x256xf32>,
    %c0_20 = arith.constant 0 : index
    %c1 = arith.constant 1 : index
    %39 = vector.load %arg8[%c0_20, %c1] : memref<8x290xf32, #tpu.memory_space<vmem>>, vector<8x256xf32>
    %c8 = arith.constant 8 : index
    %c0_21 = arith.constant 0 : index
    %40 = vector.load %arg9[%c8, %c0_21] : memref<72x256xf32, #tpu.memory_space<vmem>>, vector<8x256xf32>
    tpu.vector_store %arg9[%c8, %c0_21], %39 {strides = array<i32>} : memref<72x256xf32, #tpu.memory_space<vmem>>, vector<8x256xf32>,
    %c0_22 = arith.constant 0 : index
    %c2 = arith.constant 2 : index
    %41 = vector.load %arg8[%c0_22, %c2] : memref<8x290xf32, #tpu.memory_space<vmem>>, vector<8x256xf32>
    %cst_23 = arith.constant 0.000000e+00 : f32
    %42 = vector.shape_cast %20 : vector<1x256xi1> to vector<1x256xi1>
    %43 = vector.broadcast %42 : vector<1x256xi1> to vector<8x256xi1>
    %44 = vector.broadcast %cst_23 : f32 to vector<8x256xf32>
    %45 = arith.select %43, %41, %44 : vector<8x256xi1>, vector<8x256xf32>
    %c16 = arith.constant 16 : index
    %c0_24 = arith.constant 0 : index
    %46 = vector.load %arg9[%c16, %c0_24] : memref<72x256xf32, #tpu.memory_space<vmem>>, vector<8x256xf32>
    tpu.vector_store %arg9[%c16, %c0_24], %45 {strides = array<i32>} : memref<72x256xf32, #tpu.memory_space<vmem>>, vector<8x256xf32>,
    %c0_25 = arith.constant 0 : index
    %c16_26 = arith.constant 16 : index
    %47 = vector.load %arg8[%c0_25, %c16_26] : memref<8x290xf32, #tpu.memory_space<vmem>>, vector<8x256xf32>
    %cst_27 = arith.constant 0.000000e+00 : f32
    %48 = vector.shape_cast %18 : vector<1x256xi1> to vector<1x256xi1>
    %49 = vector.broadcast %48 : vector<1x256xi1> to vector<8x256xi1>
    %50 = vector.broadcast %cst_27 : f32 to vector<8x256xf32>
    %51 = arith.select %49, %47, %50 : vector<8x256xi1>, vector<8x256xf32>
    %c24 = arith.constant 24 : index
    %c0_28 = arith.constant 0 : index
    %52 = vector.load %arg9[%c24, %c0_28] : memref<72x256xf32, #tpu.memory_space<vmem>>, vector<8x256xf32>
    tpu.vector_store %arg9[%c24, %c0_28], %51 {strides = array<i32>} : memref<72x256xf32, #tpu.memory_space<vmem>>, vector<8x256xf32>,
    %c0_29 = arith.constant 0 : index
    %c17_30 = arith.constant 17 : index
    %53 = vector.load %arg8[%c0_29, %c17_30] : memref<8x290xf32, #tpu.memory_space<vmem>>, vector<8x256xf32>
    %c32 = arith.constant 32 : index
    %c0_31 = arith.constant 0 : index
    %54 = vector.load %arg9[%c32, %c0_31] : memref<72x256xf32, #tpu.memory_space<vmem>>, vector<8x256xf32>
    tpu.vector_store %arg9[%c32, %c0_31], %53 {strides = array<i32>} : memref<72x256xf32, #tpu.memory_space<vmem>>, vector<8x256xf32>,
    %c0_32 = arith.constant 0 : index
    %c18 = arith.constant 18 : index
    %55 = vector.load %arg8[%c0_32, %c18] : memref<8x290xf32, #tpu.memory_space<vmem>>, vector<8x256xf32>
    %cst_33 = arith.constant 0.000000e+00 : f32
    %56 = vector.shape_cast %20 : vector<1x256xi1> to vector<1x256xi1>
    %57 = vector.broadcast %56 : vector<1x256xi1> to vector<8x256xi1>
    %58 = vector.broadcast %cst_33 : f32 to vector<8x256xf32>
    %59 = arith.select %57, %55, %58 : vector<8x256xi1>, vector<8x256xf32>
    %c40 = arith.constant 40 : index
    %c0_34 = arith.constant 0 : index
    %60 = vector.load %arg9[%c40, %c0_34] : memref<72x256xf32, #tpu.memory_space<vmem>>, vector<8x256xf32>
    tpu.vector_store %arg9[%c40, %c0_34], %59 {strides = array<i32>} : memref<72x256xf32, #tpu.memory_space<vmem>>, vector<8x256xf32>,
    %c0_35 = arith.constant 0 : index
    %c32_36 = arith.constant 32 : index
    %61 = vector.load %arg8[%c0_35, %c32_36] : memref<8x290xf32, #tpu.memory_space<vmem>>, vector<8x256xf32>
    %cst_37 = arith.constant 0.000000e+00 : f32
    %62 = vector.shape_cast %18 : vector<1x256xi1> to vector<1x256xi1>
    %63 = vector.broadcast %62 : vector<1x256xi1> to vector<8x256xi1>
    %64 = vector.broadcast %cst_37 : f32 to vector<8x256xf32>
    %65 = arith.select %63, %61, %64 : vector<8x256xi1>, vector<8x256xf32>
    %c48 = arith.constant 48 : index
    %c0_38 = arith.constant 0 : index
    %66 = vector.load %arg9[%c48, %c0_38] : memref<72x256xf32, #tpu.memory_space<vmem>>, vector<8x256xf32>
    tpu.vector_store %arg9[%c48, %c0_38], %65 {strides = array<i32>} : memref<72x256xf32, #tpu.memory_space<vmem>>, vector<8x256xf32>,
    %c0_39 = arith.constant 0 : index
    %c33 = arith.constant 33 : index
    %67 = vector.load %arg8[%c0_39, %c33] : memref<8x290xf32, #tpu.memory_space<vmem>>, vector<8x256xf32>
    %c56 = arith.constant 56 : index
    %c0_40 = arith.constant 0 : index
    %68 = vector.load %arg9[%c56, %c0_40] : memref<72x256xf32, #tpu.memory_space<vmem>>, vector<8x256xf32>
    tpu.vector_store %arg9[%c56, %c0_40], %67 {strides = array<i32>} : memref<72x256xf32, #tpu.memory_space<vmem>>, vector<8x256xf32>,
    %c0_41 = arith.constant 0 : index
    %c34 = arith.constant 34 : index
    %69 = vector.load %arg8[%c0_41, %c34] : memref<8x290xf32, #tpu.memory_space<vmem>>, vector<8x256xf32>
    %cst_42 = arith.constant 0.000000e+00 : f32
    %70 = vector.shape_cast %20 : vector<1x256xi1> to vector<1x256xi1>
    %71 = vector.broadcast %70 : vector<1x256xi1> to vector<8x256xi1>
    %72 = vector.broadcast %cst_42 : f32 to vector<8x256xf32>
    %73 = arith.select %71, %69, %72 : vector<8x256xi1>, vector<8x256xf32>
    %c64 = arith.constant 64 : index
    %c0_43 = arith.constant 0 : index
    %74 = vector.load %arg9[%c64, %c0_43] : memref<72x256xf32, #tpu.memory_space<vmem>>, vector<8x256xf32>
    tpu.vector_store %arg9[%c64, %c0_43], %73 {strides = array<i32>} : memref<72x256xf32, #tpu.memory_space<vmem>>, vector<8x256xf32>,
    %c0_44 = arith.constant 0 : index
    %c0_45 = arith.constant 0 : index
    %75 = vector.load %arg3[%c0_44, %c0_45] : memref<32x72xf32, #tpu.memory_space<vmem>>, vector<32x72xf32>
    %c0_46 = arith.constant 0 : index
    %c0_47 = arith.constant 0 : index
    %76 = vector.load %arg9[%c0_46, %c0_47] : memref<72x256xf32, #tpu.memory_space<vmem>>, vector<72x256xf32>
    %cst_48 = arith.constant dense<0.000000e+00> : vector<32x256xf32>
    %77 = tpu.matmul %75, %76, %cst_48 {dimension_numbers = #tpu.dot_dimension_numbers<[1], [0], [0], [1], [0, 0, 1, 1], [], []>} : vector<32x72xf32>, vector<72x256xf32>, vector<32x256xf32> -> vector<32x256xf32>
    %c0_49 = arith.constant 0 : index
    %c0_50 = arith.constant 0 : index
    %78 = vector.load %arg4[%c0_49, %c0_50] : memref<32x1xf32, #tpu.memory_space<vmem>>, vector<32x1xf32>
    %79 = vector.broadcast %78 : vector<32x1xf32> to vector<32x256xf32>
    %80 = arith.addf %77, %79 : vector<32x256xf32>
    %cst_51 = arith.constant 0.000000e+00 : f32
    %81 = vector.broadcast %cst_51 : f32 to vector<32x256xf32>
    %82 = arith.maximumf %80, %81 : vector<32x256xf32>
    %cst_52 = arith.constant 0.000000e+00 : f32
    %83 = vector.broadcast %cst_52 : f32 to vector<32x17xf32>
    %c0_53 = arith.constant 0 : index
    %c0_54 = arith.constant 0 : index
    %84 = vector.load %arg10[%c0_53, %c0_54] : memref<32x290xf32, #tpu.memory_space<vmem>>, vector<32x17xf32>
    tpu.vector_store %arg10[%c0_53, %c0_54], %83 {strides = array<i32>} : memref<32x290xf32, #tpu.memory_space<vmem>>, vector<32x17xf32>,
    %c0_55 = arith.constant 0 : index
    %c273_56 = arith.constant 273 : index
    %85 = vector.load %arg10[%c0_55, %c273_56] : memref<32x290xf32, #tpu.memory_space<vmem>>, vector<32x17xf32>
    tpu.vector_store %arg10[%c0_55, %c273_56], %83 {strides = array<i32>} : memref<32x290xf32, #tpu.memory_space<vmem>>, vector<32x17xf32>,
    %c0_57 = arith.constant 0 : index
    %c17_58 = arith.constant 17 : index
    %86 = vector.load %arg10[%c0_57, %c17_58] : memref<32x290xf32, #tpu.memory_space<vmem>>, vector<32x256xf32>
    tpu.vector_store %arg10[%c0_57, %c17_58], %82 {strides = array<i32>} : memref<32x290xf32, #tpu.memory_space<vmem>>, vector<32x256xf32>,
    %c0_59 = arith.constant 0 : index
    %c0_60 = arith.constant 0 : index
    %87 = vector.load %arg10[%c0_59, %c0_60] : memref<32x290xf32, #tpu.memory_space<vmem>>, vector<32x256xf32>
    %cst_61 = arith.constant 0.000000e+00 : f32
    %88 = vector.shape_cast %18 : vector<1x256xi1> to vector<1x256xi1>
    %89 = vector.broadcast %88 : vector<1x256xi1> to vector<32x256xi1>
    %90 = vector.broadcast %cst_61 : f32 to vector<32x256xf32>
    %91 = arith.select %89, %87, %90 : vector<32x256xi1>, vector<32x256xf32>
    %c0_62 = arith.constant 0 : index
    %c0_63 = arith.constant 0 : index
    %92 = vector.load %arg11[%c0_62, %c0_63] : memref<288x256xf32, #tpu.memory_space<vmem>>, vector<32x256xf32>
    tpu.vector_store %arg11[%c0_62, %c0_63], %91 {strides = array<i32>} : memref<288x256xf32, #tpu.memory_space<vmem>>, vector<32x256xf32>,
    %c0_64 = arith.constant 0 : index
    %c1_65 = arith.constant 1 : index
    %93 = vector.load %arg10[%c0_64, %c1_65] : memref<32x290xf32, #tpu.memory_space<vmem>>, vector<32x256xf32>
    %c32_66 = arith.constant 32 : index
    %c0_67 = arith.constant 0 : index
    %94 = vector.load %arg11[%c32_66, %c0_67] : memref<288x256xf32, #tpu.memory_space<vmem>>, vector<32x256xf32>
    tpu.vector_store %arg11[%c32_66, %c0_67], %93 {strides = array<i32>} : memref<288x256xf32, #tpu.memory_space<vmem>>, vector<32x256xf32>,
    %c0_68 = arith.constant 0 : index
    %c2_69 = arith.constant 2 : index
    %95 = vector.load %arg10[%c0_68, %c2_69] : memref<32x290xf32, #tpu.memory_space<vmem>>, vector<32x256xf32>
    %cst_70 = arith.constant 0.000000e+00 : f32
    %96 = vector.shape_cast %20 : vector<1x256xi1> to vector<1x256xi1>
    %97 = vector.broadcast %96 : vector<1x256xi1> to vector<32x256xi1>
    %98 = vector.broadcast %cst_70 : f32 to vector<32x256xf32>
    %99 = arith.select %97, %95, %98 : vector<32x256xi1>, vector<32x256xf32>
    %c64_71 = arith.constant 64 : index
    %c0_72 = arith.constant 0 : index
    %100 = vector.load %arg11[%c64_71, %c0_72] : memref<288x256xf32, #tpu.memory_space<vmem>>, vector<32x256xf32>
    tpu.vector_store %arg11[%c64_71, %c0_72], %99 {strides = array<i32>} : memref<288x256xf32, #tpu.memory_space<vmem>>, vector<32x256xf32>,
    %c0_73 = arith.constant 0 : index
    %c16_74 = arith.constant 16 : index
    %101 = vector.load %arg10[%c0_73, %c16_74] : memref<32x290xf32, #tpu.memory_space<vmem>>, vector<32x256xf32>
    %cst_75 = arith.constant 0.000000e+00 : f32
    %102 = vector.shape_cast %18 : vector<1x256xi1> to vector<1x256xi1>
    %103 = vector.broadcast %102 : vector<1x256xi1> to vector<32x256xi1>
    %104 = vector.broadcast %cst_75 : f32 to vector<32x256xf32>
    %105 = arith.select %103, %101, %104 : vector<32x256xi1>, vector<32x256xf32>
    %c96 = arith.constant 96 : index
    %c0_76 = arith.constant 0 : index
    %106 = vector.load %arg11[%c96, %c0_76] : memref<288x256xf32, #tpu.memory_space<vmem>>, vector<32x256xf32>
    tpu.vector_store %arg11[%c96, %c0_76], %105 {strides = array<i32>} : memref<288x256xf32, #tpu.memory_space<vmem>>, vector<32x256xf32>,
    %c0_77 = arith.constant 0 : index
    %c17_78 = arith.constant 17 : index
    %107 = vector.load %arg10[%c0_77, %c17_78] : memref<32x290xf32, #tpu.memory_space<vmem>>, vector<32x256xf32>
    %c128 = arith.constant 128 : index
    %c0_79 = arith.constant 0 : index
    %108 = vector.load %arg11[%c128, %c0_79] : memref<288x256xf32, #tpu.memory_space<vmem>>, vector<32x256xf32>
    tpu.vector_store %arg11[%c128, %c0_79], %107 {strides = array<i32>} : memref<288x256xf32, #tpu.memory_space<vmem>>, vector<32x256xf32>,
    %c0_80 = arith.constant 0 : index
    %c18_81 = arith.constant 18 : index
    %109 = vector.load %arg10[%c0_80, %c18_81] : memref<32x290xf32, #tpu.memory_space<vmem>>, vector<32x256xf32>
    %cst_82 = arith.constant 0.000000e+00 : f32
    %110 = vector.shape_cast %20 : vector<1x256xi1> to vector<1x256xi1>
    %111 = vector.broadcast %110 : vector<1x256xi1> to vector<32x256xi1>
    %112 = vector.broadcast %cst_82 : f32 to vector<32x256xf32>
    %113 = arith.select %111, %109, %112 : vector<32x256xi1>, vector<32x256xf32>
    %c160 = arith.constant 160 : index
    %c0_83 = arith.constant 0 : index
    %114 = vector.load %arg11[%c160, %c0_83] : memref<288x256xf32, #tpu.memory_space<vmem>>, vector<32x256xf32>
    tpu.vector_store %arg11[%c160, %c0_83], %113 {strides = array<i32>} : memref<288x256xf32, #tpu.memory_space<vmem>>, vector<32x256xf32>,
    %c0_84 = arith.constant 0 : index
    %c32_85 = arith.constant 32 : index
    %115 = vector.load %arg10[%c0_84, %c32_85] : memref<32x290xf32, #tpu.memory_space<vmem>>, vector<32x256xf32>
    %cst_86 = arith.constant 0.000000e+00 : f32
    %116 = vector.shape_cast %18 : vector<1x256xi1> to vector<1x256xi1>
    %117 = vector.broadcast %116 : vector<1x256xi1> to vector<32x256xi1>
    %118 = vector.broadcast %cst_86 : f32 to vector<32x256xf32>
    %119 = arith.select %117, %115, %118 : vector<32x256xi1>, vector<32x256xf32>
    %c192 = arith.constant 192 : index
    %c0_87 = arith.constant 0 : index
    %120 = vector.load %arg11[%c192, %c0_87] : memref<288x256xf32, #tpu.memory_space<vmem>>, vector<32x256xf32>
    tpu.vector_store %arg11[%c192, %c0_87], %119 {strides = array<i32>} : memref<288x256xf32, #tpu.memory_space<vmem>>, vector<32x256xf32>,
    %c0_88 = arith.constant 0 : index
    %c33_89 = arith.constant 33 : index
    %121 = vector.load %arg10[%c0_88, %c33_89] : memref<32x290xf32, #tpu.memory_space<vmem>>, vector<32x256xf32>
    %c224 = arith.constant 224 : index
    %c0_90 = arith.constant 0 : index
    %122 = vector.load %arg11[%c224, %c0_90] : memref<288x256xf32, #tpu.memory_space<vmem>>, vector<32x256xf32>
    tpu.vector_store %arg11[%c224, %c0_90], %121 {strides = array<i32>} : memref<288x256xf32, #tpu.memory_space<vmem>>, vector<32x256xf32>,
    %c0_91 = arith.constant 0 : index
    %c34_92 = arith.constant 34 : index
    %123 = vector.load %arg10[%c0_91, %c34_92] : memref<32x290xf32, #tpu.memory_space<vmem>>, vector<32x256xf32>
    %cst_93 = arith.constant 0.000000e+00 : f32
    %124 = vector.shape_cast %20 : vector<1x256xi1> to vector<1x256xi1>
    %125 = vector.broadcast %124 : vector<1x256xi1> to vector<32x256xi1>
    %126 = vector.broadcast %cst_93 : f32 to vector<32x256xf32>
    %127 = arith.select %125, %123, %126 : vector<32x256xi1>, vector<32x256xf32>
    %c256 = arith.constant 256 : index
    %c0_94 = arith.constant 0 : index
    %128 = vector.load %arg11[%c256, %c0_94] : memref<288x256xf32, #tpu.memory_space<vmem>>, vector<32x256xf32>
    tpu.vector_store %arg11[%c256, %c0_94], %127 {strides = array<i32>} : memref<288x256xf32, #tpu.memory_space<vmem>>, vector<32x256xf32>,
    %c0_95 = arith.constant 0 : index
    %c0_96 = arith.constant 0 : index
    %129 = vector.load %arg5[%c0_95, %c0_96] : memref<8x288xf32, #tpu.memory_space<vmem>>, vector<8x288xf32>
    %c0_97 = arith.constant 0 : index
    %c0_98 = arith.constant 0 : index
    %130 = vector.load %arg11[%c0_97, %c0_98] : memref<288x256xf32, #tpu.memory_space<vmem>>, vector<288x256xf32>
    %cst_99 = arith.constant dense<0.000000e+00> : vector<8x256xf32>
    %131 = tpu.matmul %129, %130, %cst_99 {dimension_numbers = #tpu.dot_dimension_numbers<[1], [0], [0], [1], [0, 0, 1, 1], [], []>} : vector<8x288xf32>, vector<288x256xf32>, vector<8x256xf32> -> vector<8x256xf32>
    %132 = vector.extract_strided_slice %131 {offsets = [0, 0], sizes = [3, 256], strides = [1, 1]} : vector<8x256xf32> to vector<3x256xf32>
    %c0_100 = arith.constant 0 : index
    %c0_101 = arith.constant 0 : index
    %133 = vector.load %arg6[%c0_100, %c0_101] : memref<3x1xf32, #tpu.memory_space<vmem>>, vector<3x1xf32>
    %134 = vector.broadcast %133 : vector<3x1xf32> to vector<3x256xf32>
    %135 = arith.addf %132, %134 : vector<3x256xf32>
    %cst_102 = arith.constant 0.000000e+00 : f32
    %136 = vector.broadcast %cst_102 : f32 to vector<3x256xf32>
    %137 = arith.subf %136, %135 : vector<3x256xf32>
    %138 = math.exp %137 : vector<3x256xf32>
    %cst_103 = arith.constant 1.000000e+00 : f32
    %139 = vector.broadcast %cst_103 : f32 to vector<3x256xf32>
    %140 = arith.addf %139, %138 : vector<3x256xf32>
    %cst_104 = arith.constant 1.000000e+00 : f32
    %141 = vector.broadcast %cst_104 : f32 to vector<3x256xf32>
    %142 = arith.divf %141, %140 : vector<3x256xf32>
    %c0_105 = arith.constant 0 : index
    %c0_106 = arith.constant 0 : index
    %c0_107 = arith.constant 0 : index
    %143 = vector.load %arg7[%c0_105, %c0_106, %c0_107] : memref<1x3x256xf32, #tpu.memory_space<vmem>>, vector<1x3x256xf32>
    %144 = vector.shape_cast %143 : vector<1x3x256xf32> to vector<3x256xf32>
    %145 = vector.shape_cast %142 : vector<3x256xf32> to vector<1x3x256xf32>
    tpu.vector_store %arg7[%c0_105, %c0_106, %c0_107], %145 {strides = array<i32>} : memref<1x3x256xf32, #tpu.memory_space<vmem>>, vector<1x3x256xf32>,
    return
  }
  func.func @transform_0(%arg0: i32) -> (i32, i32, i32) {
    %c0_i32 = arith.constant 0 : i32
    %c0_i32_0 = arith.constant 0 : i32
    %c0_i32_1 = arith.constant 0 : i32
    return %arg0, %c0_i32, %c0_i32_0 : i32, i32, i32
  }
  func.func @transform_1(%arg0: i32) -> (i32, i32, i32) {
    %c0_i32 = arith.constant 0 : i32
    %c0_i32_0 = arith.constant 0 : i32
    %c0_i32_1 = arith.constant 0 : i32
    return %arg0, %c0_i32, %c0_i32_0 : i32, i32, i32
  }
  func.func @transform_2(%arg0: i32) -> (i32, i32) {
    %c0_i32 = arith.constant 0 : i32
    %c0_i32_0 = arith.constant 0 : i32
    %c0_i32_1 = arith.constant 0 : i32
    return %c0_i32, %c0_i32_0 : i32, i32
  }
  func.func @transform_3(%arg0: i32) -> (i32, i32) {
    %c0_i32 = arith.constant 0 : i32
    %c0_i32_0 = arith.constant 0 : i32
    %c0_i32_1 = arith.constant 0 : i32
    return %c0_i32, %c0_i32_0 : i32, i32
  }
  func.func @transform_4(%arg0: i32) -> (i32, i32) {
    %c0_i32 = arith.constant 0 : i32
    %c0_i32_0 = arith.constant 0 : i32
    %c0_i32_1 = arith.constant 0 : i32
    return %c0_i32, %c0_i32_0 : i32, i32
  }
  func.func @transform_5(%arg0: i32) -> (i32, i32) {
    %c0_i32 = arith.constant 0 : i32
    %c0_i32_0 = arith.constant 0 : i32
    %c0_i32_1 = arith.constant 0 : i32
    return %c0_i32, %c0_i32_0 : i32, i32
  }
  func.func @transform_6(%arg0: i32) -> (i32, i32, i32) {
    %c0_i32 = arith.constant 0 : i32
    %c0_i32_0 = arith.constant 0 : i32
    %c0_i32_1 = arith.constant 0 : i32
    return %arg0, %c0_i32, %c0_i32_0 : i32, i32, i32
  }
}

</mosaic_0001>

<llo_original>
// kernel: side_view_feature_extractor.1
$region0: #{side_view_feature_extractor.1}
  #allocation0 [shape = 'u32[]', space=smem, size = 0x4, offset = 0x4, fixed_abs, tag = 'smem constant byte address 0x4 - core index']
  #allocation1 [shape = 'u32[144,128]{1,0:T(1,128)}', space=vmem, size = 0x12000, scoped, tag = 'internal scratch']
  #allocation2 [shape = 'f32[8,290]{1,0:T(8,128)}', space=vmem, size = 0x3000, scoped, tag = 'scratch operand']
  #allocation3 [shape = 'f32[72,256]{1,0:T(8,128)}', space=vmem, size = 0x12000, scoped, tag = 'scratch operand']
  #allocation4 [shape = 'f32[32,290]{1,0:T(8,128)}', space=vmem, size = 0xc000, scoped, tag = 'scratch operand']
  #allocation5 [shape = 'f32[288,256]{1,0:T(8,128)}', space=vmem, size = 0x48000, scoped, tag = 'scratch operand']
  %s0 = inlined_call_operand.vmem [shape: f32[2,4,256], index: 0, kind: input, shape index: {}]
  %s1 = inlined_call_operand.vmem [shape: f32[2,1,256], index: 1, kind: input, shape index: {}]
  %s2 = inlined_call_operand.vmem [shape: f32[32,72], index: 2, kind: input, shape index: {}]
  %s3 = inlined_call_operand.vmem [shape: f32[32,1], index: 3, kind: input, shape index: {}]
  %s4 = inlined_call_operand.vmem [shape: f32[8,288], index: 4, kind: input, shape index: {}]
  %s5 = inlined_call_operand.vmem [shape: f32[3,1], index: 5, kind: input, shape index: {}]
  %s6 = inlined_call_operand.vmem [shape: f32[2,3,256], index: 6, kind: output, shape index: {}]
  %s7 = sld [smem:[#allocation0]]
  $region57: #{side_view_feature_extractor.1} parent=0
    _
  %s9 = ssub.s32 1, %s7
  %s10 = scalar_select 0, %s9, %s7
  loop: start=0, step=1, limit=4
  $region2: #{side_view_feature_extractor.1} parent=0 // loop_pre_header
    _
  $region3: #{side_view_feature_extractor.1} parent=0 // loop_header
    %s12 = sphi 0, %s16
    %p13 = scmp.ge.s32.totalorder %s12, 4
    %s22 = sphi 0, %s24
    %s25 = sphi 0, %s22
    %s26 = sphi 0, %s25
    %s42 = sphi 0, %s26
    %s48 = sphi 0, %s50
    %s51 = sphi 0, %s48
    %s52 = sphi 0, %s51
    %s68 = sphi 0, %s52
    %s72 = sphi 0, %s72
    %s74 = sphi 0, %s72
    %s75 = sphi 0, %s74
    %s89 = sphi 0, %s75
    %s93 = sphi 0, %s93
    %s95 = sphi 0, %s93
    %s96 = sphi 0, %s95
    %s110 = sphi 0, %s96
    %s114 = sphi 0, %s114
    %s116 = sphi 0, %s114
    %s117 = sphi 0, %s116
    %s131 = sphi 0, %s117
    %s135 = sphi 0, %s135
    %s137 = sphi 0, %s135
    %s138 = sphi 0, %s137
    %s152 = sphi 0, %s138
    %s158 = sphi 0, %s160
    %s161 = sphi 0, %s158
    %s162 = sphi 0, %s161
    %s178 = sphi 0, %s162
  $region4: #{side_view_feature_extractor.1} parent=0 // loop_header_branch
    %15 = sbr.rel (%p13) target = $region8
  $region5: #{side_view_feature_extractor.1} parent=0 // loop_body
    %s17 = ssub.s32 %s12, 1
    %s18 = ssub.s32 %s12, 2
    %s19 = sadd.s32 %s12, 1
    %s20 = ssub.s32 %s12, %s19
    %p21 = scmp.eq.s32.totalorder %s20, 0
    %s23 = sadd.s32 %s22, 1
    %s24 = scalar_select %p21, %s22, %s23
    %p27 = pneg %p21
    %p28 = scmp.eq.s32.totalorder %s12, 1
    %p29 = por %p27, %p28
    %p30 = scmp.ne.s32.totalorder %s22, %s25
    %p31 = scmp.eq.s32.totalorder %s12, 0
    %p32 = por %p30, %p31
    %p33 = scmp.ne.s32.totalorder %s22, %s25
    %p34 = scmp.eq.s32.totalorder %s17, 1
    %p35 = por %p33, %p34
    %p36 = scmp.ne.s32.totalorder %s25, %s26
    %p37 = scmp.eq.s32.totalorder %s17, 0
    %p38 = por %p36, %p37
    %p39 = scmp.ne.s32.totalorder %s25, %s26
    %p40 = scmp.eq.s32.totalorder %s18, 1
    %p41 = por %p39, %p40
    %p43 = scmp.ne.s32.totalorder %s26, %s42
    %p44 = scmp.eq.s32.totalorder %s18, 0
    %p45 = por %p43, %p44
    %s46 = ssub.s32 %s12, %s19
    %p47 = scmp.eq.s32.totalorder %s46, 0
    %s49 = sadd.s32 %s48, 1
    %s50 = scalar_select %p47, %s48, %s49
    %p53 = pneg %p47
    %p54 = scmp.eq.s32.totalorder %s12, 1
    %p55 = por %p53, %p54
    %p56 = scmp.ne.s32.totalorder %s48, %s51
    %p57 = scmp.eq.s32.totalorder %s12, 0
    %p58 = por %p56, %p57
    %p59 = scmp.ne.s32.totalorder %s48, %s51
    %p60 = scmp.eq.s32.totalorder %s17, 1
    %p61 = por %p59, %p60
    %p62 = scmp.ne.s32.totalorder %s51, %s52
    %p63 = scmp.eq.s32.totalorder %s17, 0
    %p64 = por %p62, %p63
    %p65 = scmp.ne.s32.totalorder %s51, %s52
    %p66 = scmp.eq.s32.totalorder %s18, 1
    %p67 = por %p65, %p66
    %p69 = scmp.ne.s32.totalorder %s52, %s68
    %p70 = scmp.eq.s32.totalorder %s18, 0
    %p71 = por %p69, %p70
    %s73 = sadd.s32 %s72, 1
    %p76 = scmp.eq.s32.totalorder %s12, 1
    %p77 = scmp.ne.s32.totalorder %s72, %s74
    %p78 = scmp.eq.s32.totalorder %s12, 0
    %p79 = por %p77, %p78
    %p80 = scmp.ne.s32.totalorder %s72, %s74
    %p81 = scmp.eq.s32.totalorder %s17, 1
    %p82 = por %p80, %p81
    %p83 = scmp.ne.s32.totalorder %s74, %s75
    %p84 = scmp.eq.s32.totalorder %s17, 0
    %p85 = por %p83, %p84
    %p86 = scmp.ne.s32.totalorder %s74, %s75
    %p87 = scmp.eq.s32.totalorder %s18, 1
    %p88 = por %p86, %p87
    %p90 = scmp.ne.s32.totalorder %s75, %s89
    %p91 = scmp.eq.s32.totalorder %s18, 0
    %p92 = por %p90, %p91
    %s94 = sadd.s32 %s93, 1
    %p97 = scmp.eq.s32.totalorder %s12, 1
    %p98 = scmp.ne.s32.totalorder %s93, %s95
    %p99 = scmp.eq.s32.totalorder %s12, 0
    %p100 = por %p98, %p99
    %p101 = scmp.ne.s32.totalorder %s93, %s95
    %p102 = scmp.eq.s32.totalorder %s17, 1
    %p103 = por %p101, %p102
    %p104 = scmp.ne.s32.totalorder %s95, %s96
    %p105 = scmp.eq.s32.totalorder %s17, 0
    %p106 = por %p104, %p105
    %p107 = scmp.ne.s32.totalorder %s95, %s96
    %p108 = scmp.eq.s32.totalorder %s18, 1
    %p109 = por %p107, %p108
    %p111 = scmp.ne.s32.totalorder %s96, %s110
    %p112 = scmp.eq.s32.totalorder %s18, 0
    %p113 = por %p111, %p112
    %s115 = sadd.s32 %s114, 1
    %p118 = scmp.eq.s32.totalorder %s12, 1
    %p119 = scmp.ne.s32.totalorder %s114, %s116
    %p120 = scmp.eq.s32.totalorder %s12, 0
    %p121 = por %p119, %p120
    %p122 = scmp.ne.s32.totalorder %s114, %s116
    %p123 = scmp.eq.s32.totalorder %s17, 1
    %p124 = por %p122, %p123
    %p125 = scmp.ne.s32.totalorder %s116, %s117
    %p126 = scmp.eq.s32.totalorder %s17, 0
    %p127 = por %p125, %p126
    %p128 = scmp.ne.s32.totalorder %s116, %s117
    %p129 = scmp.eq.s32.totalorder %s18, 1
    %p130 = por %p128, %p129
    %p132 = scmp.ne.s32.totalorder %s117, %s131
    %p133 = scmp.eq.s32.totalorder %s18, 0
    %p134 = por %p132, %p133
    %s136 = sadd.s32 %s135, 1
    %p139 = scmp.eq.s32.totalorder %s12, 1
    %p140 = scmp.ne.s32.totalorder %s135, %s137
    %p141 = scmp.eq.s32.totalorder %s12, 0
    %p142 = por %p140, %p141
    %p143 = scmp.ne.s32.totalorder %s135, %s137
    %p144 = scmp.eq.s32.totalorder %s17, 1
    %p145 = por %p143, %p144
    %p146 = scmp.ne.s32.totalorder %s137, %s138
    %p147 = scmp.eq.s32.totalorder %s17, 0
    %p148 = por %p146, %p147
    %p149 = scmp.ne.s32.totalorder %s137, %s138
    %p150 = scmp.eq.s32.totalorder %s18, 1
    %p151 = por %p149, %p150
    %p153 = scmp.ne.s32.totalorder %s138, %s152
    %p154 = scmp.eq.s32.totalorder %s18, 0
    %p155 = por %p153, %p154
    %s156 = ssub.s32 %s12, %s19
    %p157 = scmp.eq.s32.totalorder %s156, 0
    %s159 = sadd.s32 %s158, 1
    %s160 = scalar_select %p157, %s158, %s159
    %p163 = pneg %p157
    %p164 = scmp.eq.s32.totalorder %s12, 1
    %p165 = por %p163, %p164
    %p166 = scmp.ne.s32.totalorder %s158, %s161
    %p167 = scmp.eq.s32.totalorder %s12, 0
    %p168 = por %p166, %p167
    %p169 = scmp.ne.s32.totalorder %s158, %s161
    %p170 = scmp.eq.s32.totalorder %s17, 1
    %p171 = por %p169, %p170
    %p172 = scmp.ne.s32.totalorder %s161, %s162
    %p173 = scmp.eq.s32.totalorder %s17, 0
    %p174 = por %p172, %p173
    %p175 = scmp.ne.s32.totalorder %s161, %s162
    %p176 = scmp.eq.s32.totalorder %s18, 1
    %p177 = por %p175, %p176
    %p179 = scmp.ne.s32.totalorder %s162, %s178
    %p180 = scmp.eq.s32.totalorder %s18, 0
    %p181 = por %p179, %p180
    %p182 = scmp.le.s32.totalorder 1, %s12
    %p183 = scmp.lt.s32.totalorder %s12, 3
    %p184 = pnand %p182, %p183
    %p185 = pneg %p184
    // Predicated region
    $region9: #{side_view_feature_extractor.1} parent=5 // pred_check
      _
    $region10: #{side_view_feature_extractor.1} parent=5 // pred_check_branch
      %187 = sbr.rel (%p184) target = $region12
    $region11: #{side_view_feature_extractor.1} parent=5 // pred_region
      %s188 = ssub.s32 %s12, 1
      // Predicated region
      $region13: #{side_view_feature_extractor.1} parent=11 // pred_check
        %p189 = pneg %p85
      $region14: #{side_view_feature_extractor.1} parent=11 // pred_check_branch
        %191 = sbr.rel (%p189) target = $region16
      $region15: #{side_view_feature_extractor.1} parent=11 // pred_region
        _
      $region16: #{side_view_feature_extractor.1} parent=11 // pred_fallthru
        _
      // Predicated region
      $region17: #{side_view_feature_extractor.1} parent=11 // pred_check
        %p192 = pneg %p106
      $region18: #{side_view_feature_extractor.1} parent=11 // pred_check_branch
        %194 = sbr.rel (%p192) target = $region20
      $region19: #{side_view_feature_extractor.1} parent=11 // pred_region
        _
      $region20: #{side_view_feature_extractor.1} parent=11 // pred_fallthru
        _
      // Predicated region
      $region21: #{side_view_feature_extractor.1} parent=11 // pred_check
        %p195 = pneg %p127
      $region22: #{side_view_feature_extractor.1} parent=11 // pred_check_branch
        %197 = sbr.rel (%p195) target = $region24
      $region23: #{side_view_feature_extractor.1} parent=11 // pred_region
        _
      $region24: #{side_view_feature_extractor.1} parent=11 // pred_fallthru
        _
      // Predicated region
      $region25: #{side_view_feature_extractor.1} parent=11 // pred_check
        %p198 = pneg %p148
      $region26: #{side_view_feature_extractor.1} parent=11 // pred_check_branch
        %200 = sbr.rel (%p198) target = $region28
      $region27: #{side_view_feature_extractor.1} parent=11 // pred_region
        _
      $region28: #{side_view_feature_extractor.1} parent=11 // pred_fallthru
        _
    $region12: #{side_view_feature_extractor.1} parent=5 // pred_fallthru
      _
    %p201 = scmp.lt.s32.totalorder %s12, 2
    // Predicated region
    $region29: #{side_view_feature_extractor.1} parent=5 // pred_check
      %p202 = pneg %p201
    $region30: #{side_view_feature_extractor.1} parent=5 // pred_check_branch
      %204 = sbr.rel (%p202) target = $region32
    $region31: #{side_view_feature_extractor.1} parent=5 // pred_region
      // Predicated region
      $region33: #{side_view_feature_extractor.1} parent=31 // pred_check
        %p205 = pneg %p32
      $region34: #{side_view_feature_extractor.1} parent=31 // pred_check_branch
        %207 = sbr.rel (%p205) target = $region36
      $region35: #{side_view_feature_extractor.1} parent=31 // pred_region
        %p208 = scmp.lt.s32.totalorder %s12, 1
        %s209 = scalar_select %p208, %s12, 1
        %s210 = smul.addr %s209, 2
        %s211 = smul.addr %s210, 4
        %s212 = scalar_lea.vmem %s0, %s211
      $region36: #{side_view_feature_extractor.1} parent=31 // pred_fallthru
        _
      // Predicated region
      $region37: #{side_view_feature_extractor.1} parent=31 // pred_check
        %p213 = pneg %p58
      $region38: #{side_view_feature_extractor.1} parent=31 // pred_check_branch
        %215 = sbr.rel (%p213) target = $region40
      $region39: #{side_view_feature_extractor.1} parent=31 // pred_region
        %p216 = scmp.lt.s32.totalorder %s12, 1
        %s217 = scalar_select %p216, %s12, 1
        %s218 = smul.addr %s217, 2
        %s219 = scalar_lea.vmem %s1, %s218
      $region40: #{side_view_feature_extractor.1} parent=31 // pred_fallthru
        _
    $region32: #{side_view_feature_extractor.1} parent=5 // pred_fallthru
      _
    %p220 = scmp.le.s32.totalorder 1, %s12
    %p221 = scmp.lt.s32.totalorder %s12, 3
    %p222 = pnand %p220, %p221
    %p223 = pneg %p222
    // Predicated region
    $region41: #{side_view_feature_extractor.1} parent=5 // pred_check
      _
    $region42: #{side_view_feature_extractor.1} parent=5 // pred_check_branch
      %225 = sbr.rel (%p222) target = $region44
    $region43: #{side_view_feature_extractor.1} parent=5 // pred_region
      %s226 = ssub.s32 %s12, 1
      %p227 = scmp.lt.s32.totalorder %s17, 1
      %s228 = scalar_select %p227, %s17, 1
      %s229 = smul.addr %s228, 2
      %s230 = smul.addr %s229, 4
      %s231 = scalar_lea.vmem %s0, %s230
      %p232 = pneg %p38
      %p233 = pneg %p35
      %p234 = scmp.lt.s32.totalorder %s17, 1
      %s235 = scalar_select %p234, %s17, 1
      %s236 = smul.addr %s235, 2
      %s237 = scalar_lea.vmem %s1, %s236
      %p238 = pneg %p64
      %p239 = pneg %p61
      %p240 = pneg %p85
      %p241 = pneg %p82
      %p242 = pneg %p106
      %p243 = pneg %p103
      %p244 = pneg %p127
      %p245 = pneg %p124
      %p246 = pneg %p148
      %p247 = pneg %p145
      %p248 = pneg %p174
      %p249 = pneg %p171
      %p250 = scmp.lt.s32.totalorder %s17, 1
      %s251 = scalar_select %p250, %s17, 1
      %s252 = smul.addr %s251, 2
      %s253 = smul.addr %s252, 4
      %s254 = scalar_lea.vmem %s6, %s253
      %p255 = scmp.lt.s32.totalorder %s17, 1
      %s256 = scalar_select %p255, %s17, 1
      %s257 = smul.addr %s256, 2
      %s258 = smul.addr %s257, 4
      %s259 = scalar_lea.vmem %s0, %s258
      %p260 = scmp.lt.s32.totalorder %s17, 1
      %s261 = scalar_select %p260, %s17, 1
      %s262 = smul.addr %s261, 2
      %s263 = scalar_lea.vmem %s1, %s262
      %p264 = scmp.lt.s32.totalorder %s17, 1
      %s265 = scalar_select %p264, %s17, 1
      %s266 = smul.addr %s265, 2
      %s267 = smul.addr %s266, 4
      %s268 = scalar_lea.vmem %s6, %s267
      %v269 = vlaneseq
      %v270 = vand.u32 %v269, 127
      %v271 = vadd.s32 %v270, 128
      %vm272 = vcmp.lt.s32.totalorder %v270, 0
      %v273 = vsub.s32 0, %v270
      %v274 = vsel %vm272, %v273, %v270
      %v275 = vshrl.u32 %v274, 4
      %v276 = vand.u32 %v274, 15
      %v277 = vsub.s32 0, %v276
      %v278 = vsel %vm272, %v277, %v276
      %vm279 = vcmp.lt.s32.totalorder %v271, 0
      %v280 = vsub.s32 0, %v271
      %v281 = vsel %vm279, %v280, %v271
      %v282 = vshrl.u32 %v281, 4
      %v283 = vand.u32 %v281, 15
      %v284 = vsub.s32 0, %v283
      %v285 = vsel %vm279, %v284, %v283
      %vm286 = vcmp.ne.s32.totalorder %v278, 0
      %vm287 = vcmp.ne.s32.totalorder %v285, 0
      %vm288 = vcmp.lt.s32.totalorder %v278, 0
      %vm289 = vcmp.lt.s32.totalorder %v285, 0
      %vm290 = vmand %vm288, %vm286
      %vm291 = vmand %vm289, %vm287
      %v292 = vadd.s32 %v278, 16
      %v293 = vadd.s32 %v285, 16
      %v294 = vsel %vm290, %v292, %v278
      %v295 = vsel %vm291, %v293, %v285
      %vm296 = vcmp.ne.s32.totalorder %v294, 0
      %vm297 = vcmp.ne.s32.totalorder %v295, 0
      %vm298 = vcmp.ne.s32.totalorder %v294, 15
      %vm299 = vcmp.ne.s32.totalorder %v295, 15
      %v300 = vld [vmem:[%s259] sm:$0xff]
      %v301 = vld [vmem:[%s263] sm:$0x3]
      %v303 = vlaneseq
      %v304 = vshrl.u32 %v303, 7
      %v305 = vsub.s32 0, %v304
      %v306 = vrot.slane %v301, %v305
      %v307 = vlaneseq
      %v308 = vshrl.u32 %v307, 7
      %v309 = vsub.s32 1, %v308
      %v310 = vrot.slane %v301, %v309
      %v311 = vcombine.low %v306, %v310
      %v313 = vmul.f32 %v300, %v311
      %vm314 = vcmask 138240
      %315 = vst.msk [vmem:[#allocation2] sm:$0xff] %vm314, 0.0
      %vm316 = vcmask 277640
      %317 = vst.msk [vmem:[#allocation2 + $0x10] sm:$0xff] %vm316, 0.0
      %318 = vst [vmem:[#allocation2] sm:$0xf0] 0.0
      %319 = vst [vmem:[#allocation2 + $0x8] sm:$0xf0] 0.0
      %vm320 = vcmask 277508
      %321 = vst.msk [vmem:[#allocation2 + $0x10] sm:$0xf0] %vm320, 0.0
      %v323 = vcombine.high %v313, %v313
      %324 = vrot.lane.b32.xlu0 %v313, 17
      %v325 = vpop.permute.xlu0 %324
      %326 = vrot.lane.b32.xlu0 %v323, 17
      %v327 = vpop.permute.xlu0 %326
      %v328 = vsel %vm314, %v325, %v327
      %vm332 = vcmask 1043592
      %333 = vst.msk [vmem:[#allocation2] sm:$0xf] %vm332, %v325
      %334 = vst [vmem:[#allocation2 + $0x8] sm:$0xf] %v328
      %vm335 = vcmask 134144
      %336 = vst.msk [vmem:[#allocation2 + $0x10] sm:$0xf] %vm335, %v327
      %v337 = vld [vmem:[#allocation2] sm:$0xff]
      %v338 = vld [vmem:[#allocation2 + $0x8] sm:$0xff]
      %v339 = vsel %vm296, 1, 0
      %v340 = vsel %vm297, 1, 0
      %vm341 = vcmp.eq.s32.totalorder %v339, 1
      %vm342 = vcmp.eq.s32.totalorder %v340, 1
      %v343 = vsel %vm341, %v337, 0.0
      %v344 = vsel %vm342, %v338, 0.0
      %345 = vst [vmem:[#allocation3] sm:$0xff] %v343
      %346 = vst [vmem:[#allocation3 + $0x8] sm:$0xff] %v344
      %v347 = vld [vmem:[#allocation2] sm:$0xff]
      %v348 = vld [vmem:[#allocation2 + $0x8] sm:$0xff]
      %v349 = vld [vmem:[#allocation2 + $0x10] sm:$0xff]
      %353 = vrot.lane.b32.xlu0 %v347, 127
      %v354 = vpop.permute.xlu0 %353
      %355 = vrot.lane.b32.xlu0 %v348, 127
      %v356 = vpop.permute.xlu0 %355
      %357 = vrot.lane.b32.xlu0 %v349, 127
      %v358 = vpop.permute.xlu0 %357
      %vm359 = vcmask 1039360
      %v360 = vsel %vm359, %v354, %v356
      %v361 = vsel %vm359, %v356, %v358
      %364 = vst [vmem:[#allocation3 + $0x10] sm:$0xff] %v360
      %365 = vst [vmem:[#allocation3 + $0x18] sm:$0xff] %v361
      %v366 = vld [vmem:[#allocation2] sm:$0xff]
      %v367 = vld [vmem:[#allocation2 + $0x8] sm:$0xff]
      %v368 = vld [vmem:[#allocation2 + $0x10] sm:$0xff]
      %v369 = vsel %vm298, 1, 0
      %v370 = vsel %vm299, 1, 0
      %vm371 = vcmp.eq.s32.totalorder %v369, 1
      %vm372 = vcmp.eq.s32.totalorder %v370, 1
      %376 = vrot.lane.b32.xlu0 %v366, 126
      %v377 = vpop.permute.xlu0 %376
      %378 = vrot.lane.b32.xlu0 %v367, 126
      %v379 = vpop.permute.xlu0 %378
      %380 = vrot.lane.b32.xlu0 %v368, 126
      %v381 = vpop.permute.xlu0 %380
      %vm382 = vcmask 1031168
      %v383 = vsel %vm382, %v377, %v379
      %v384 = vsel %vm382, %v379, %v381
      %v387 = vsel %vm371, %v383, 0.0
      %v388 = vsel %vm372, %v384, 0.0
      %389 = vst [vmem:[#allocation3 + $0x20] sm:$0xff] %v387
      %390 = vst [vmem:[#allocation3 + $0x28] sm:$0xff] %v388
      %v391 = vld [vmem:[#allocation2] sm:$0xff]
      %v392 = vld [vmem:[#allocation2 + $0x8] sm:$0xff]
      %v393 = vld [vmem:[#allocation2 + $0x10] sm:$0xff]
      %397 = vrot.lane.b32.xlu0 %v391, 112
      %v398 = vpop.permute.xlu0 %397
      %399 = vrot.lane.b32.xlu0 %v392, 112
      %v400 = vpop.permute.xlu0 %399
      %401 = vrot.lane.b32.xlu0 %v393, 112
      %v402 = vpop.permute.xlu0 %401
      %vm403 = vcmask 916480
      %v404 = vsel %vm403, %v398, %v400
      %v405 = vsel %vm403, %v400, %v402
      %v408 = vsel %vm341, %v404, 0.0
      %v409 = vsel %vm342, %v405, 0.0
      %410 = vst [vmem:[#allocation3 + $0x30] sm:$0xff] %v408
      %411 = vst [vmem:[#allocation3 + $0x38] sm:$0xff] %v409
      %v412 = vld [vmem:[#allocation2] sm:$0xff]
      %v413 = vld [vmem:[#allocation2 + $0x8] sm:$0xff]
      %v414 = vld [vmem:[#allocation2 + $0x10] sm:$0xff]
      %418 = vrot.lane.b32.xlu0 %v412, 111
      %v419 = vpop.permute.xlu0 %418
      %420 = vrot.lane.b32.xlu0 %v413, 111
      %v421 = vpop.permute.xlu0 %420
      %422 = vrot.lane.b32.xlu0 %v414, 111
      %v423 = vpop.permute.xlu0 %422
      %vm424 = vcmask 908288
      %v425 = vsel %vm424, %v419, %v421
      %v426 = vsel %vm424, %v421, %v423
      %429 = vst [vmem:[#allocation3 + $0x40] sm:$0xff] %v425
      %430 = vst [vmem:[#allocation3 + $0x48] sm:$0xff] %v426
      %v431 = vld [vmem:[#allocation2] sm:$0xff]
      %v432 = vld [vmem:[#allocation2 + $0x8] sm:$0xff]
      %v433 = vld [vmem:[#allocation2 + $0x10] sm:$0xff]
      %437 = vrot.lane.b32.xlu0 %v431, 110
      %v438 = vpop.permute.xlu0 %437
      %439 = vrot.lane.b32.xlu0 %v432, 110
      %v440 = vpop.permute.xlu0 %439
      %441 = vrot.lane.b32.xlu0 %v433, 110
      %v442 = vpop.permute.xlu0 %441
      %vm443 = vcmask 900096
      %v444 = vsel %vm443, %v438, %v440
      %v445 = vsel %vm443, %v440, %v442
      %v448 = vsel %vm371, %v444, 0.0
      %v449 = vsel %vm372, %v445, 0.0
      %450 = vst [vmem:[#allocation3 + $0x50] sm:$0xff] %v448
      %451 = vst [vmem:[#allocation3 + $0x58] sm:$0xff] %v449
      %v452 = vld [vmem:[#allocation2] sm:$0xff]
      %v453 = vld [vmem:[#allocation2 + $0x8] sm:$0xff]
      %v454 = vld [vmem:[#allocation2 + $0x10] sm:$0xff]
      %458 = vrot.lane.b32.xlu0 %v452, 96
      %v459 = vpop.permute.xlu0 %458
      %460 = vrot.lane.b32.xlu0 %v453, 96
      %v461 = vpop.permute.xlu0 %460
      %462 = vrot.lane.b32.xlu0 %v454, 96
      %v463 = vpop.permute.xlu0 %462
      %vm464 = vcmask 785408
      %v465 = vsel %vm464, %v459, %v461
      %v466 = vsel %vm464, %v461, %v463
      %v469 = vsel %vm341, %v465, 0.0
      %v470 = vsel %vm342, %v466, 0.0
      %471 = vst [vmem:[#allocation3 + $0x60] sm:$0xff] %v469
      %472 = vst [vmem:[#allocation3 + $0x68] sm:$0xff] %v470
      %v473 = vld [vmem:[#allocation2] sm:$0xff]
      %v474 = vld [vmem:[#allocation2 + $0x8] sm:$0xff]
      %v475 = vld [vmem:[#allocation2 + $0x10] sm:$0xff]
      %479 = vrot.lane.b32.xlu0 %v473, 95
      %v480 = vpop.permute.xlu0 %479
      %481 = vrot.lane.b32.xlu0 %v474, 95
      %v482 = vpop.permute.xlu0 %481
      %483 = vrot.lane.b32.xlu0 %v475, 95
      %v484 = vpop.permute.xlu0 %483
      %vm485 = vcmask 777216
      %v486 = vsel %vm485, %v480, %v482
      %v487 = vsel %vm485, %v482, %v484
      %490 = vst [vmem:[#allocation3 + $0x70] sm:$0xff] %v486
      %491 = vst [vmem:[#allocation3 + $0x78] sm:$0xff] %v487
      %v492 = vld [vmem:[#allocation2] sm:$0xff]
      %v493 = vld [vmem:[#allocation2 + $0x8] sm:$0xff]
      %v494 = vld [vmem:[#allocation2 + $0x10] sm:$0xff]
      %498 = vrot.lane.b32.xlu0 %v492, 94
      %v499 = vpop.permute.xlu0 %498
      %500 = vrot.lane.b32.xlu0 %v493, 94
      %v501 = vpop.permute.xlu0 %500
      %502 = vrot.lane.b32.xlu0 %v494, 94
      %v503 = vpop.permute.xlu0 %502
      %vm504 = vcmask 769024
      %v505 = vsel %vm504, %v499, %v501
      %v506 = vsel %vm504, %v501, %v503
      %v509 = vsel %vm371, %v505, 0.0
      %v510 = vsel %vm372, %v506, 0.0
      %511 = vst [vmem:[#allocation3 + $0x80] sm:$0xff] %v509
      %512 = vst [vmem:[#allocation3 + $0x88] sm:$0xff] %v510
      %v513 = vld [vmem:[%s2] sm:$0xff]
      %v514 = vld [vmem:[%s2 + $0x8] sm:$0xff]
      %v515 = vld [vmem:[%s2 + $0x10] sm:$0xff]
      %v516 = vld [vmem:[%s2 + $0x18] sm:$0xff]
      %v517 = vld [vmem:[#allocation3] sm:$0xff]
      %v518 = vld [vmem:[#allocation3 + $0x8] sm:$0xff]
      %v519 = vld [vmem:[#allocation3 + $0x10] sm:$0xff]
      %v520 = vld [vmem:[#allocation3 + $0x18] sm:$0xff]
      %v521 = vld [vmem:[#allocation3 + $0x20] sm:$0xff]
      %v522 = vld [vmem:[#allocation3 + $0x28] sm:$0xff]
      %v523 = vld [vmem:[#allocation3 + $0x30] sm:$0xff]
      %v524 = vld [vmem:[#allocation3 + $0x38] sm:$0xff]
      %v525 = vld [vmem:[#allocation3 + $0x40] sm:$0xff]
      %v526 = vld [vmem:[#allocation3 + $0x48] sm:$0xff]
      %v527 = vld [vmem:[#allocation3 + $0x50] sm:$0xff]
      %v528 = vld [vmem:[#allocation3 + $0x58] sm:$0xff]
      %v529 = vld [vmem:[#allocation3 + $0x60] sm:$0xff]
      %v530 = vld [vmem:[#allocation3 + $0x68] sm:$0xff]
      %v531 = vld [vmem:[#allocation3 + $0x70] sm:$0xff]
      %v532 = vld [vmem:[#allocation3 + $0x78] sm:$0xff]
      %v533 = vld [vmem:[#allocation3 + $0x80] sm:$0xff]
      %v534 = vld [vmem:[#allocation3 + $0x88] sm:$0xff]
      %v535 = vld [vmem:[%s3] sm:$0xff]
      %v536 = vld [vmem:[%s3 + $0x8] sm:$0xff]
      %v537 = vld [vmem:[%s3 + $0x10] sm:$0xff]
      %v538 = vld [vmem:[%s3 + $0x18] sm:$0xff]
      %540 = vset.pattern.permute.xlu0 0
      %541 = vperm.xlu0 %540, %v535
      %v542 = vpop.permute.xlu0 %541
      %545 = vset.pattern.permute.xlu0 0
      %546 = vperm.xlu0 %545, %v536
      %v547 = vpop.permute.xlu0 %546
      %550 = vset.pattern.permute.xlu0 0
      %551 = vperm.xlu0 %550, %v537
      %v552 = vpop.permute.xlu0 %551
      %555 = vset.pattern.permute.xlu0 0
      %556 = vperm.xlu0 %555, %v538
      %v557 = vpop.permute.xlu0 %556
      %vm559 = vcmask 588800
      %v561 = vsel %vm559, %v513, 0
      %v564 = vsel %vm559, %v514, 0
      %v567 = vsel %vm559, %v515, 0
      %v570 = vsel %vm559, %v516, 0
      %572 = vmatprep.subr.mxu0 %v518
      %573 = vmatpush1.msra.mxu0 %v517
      %574 = vmatprep.subr.mxu0 %v520
      %575 = vmatpush1.msra.mxu0 %v519
      %576 = vmatprep.subr.mxu0 %v522
      %577 = vmatpush1.msra.mxu0 %v521
      %578 = vmatprep.subr.mxu0 %v524
      %579 = vmatpush1.msra.mxu0 %v523
      %580 = vmatprep.subr.mxu0 %v526
      %581 = vmatpush1.msra.mxu0 %v525
      %582 = vmatprep.subr.mxu0 %v528
      %583 = vmatpush1.msra.mxu0 %v527
      %584 = vmatprep.subr.mxu0 %v530
      %585 = vmatpush1.msra.mxu0 %v529
      %586 = vmatprep.subr.mxu0 %v532
      %587 = vmatpush1.msra.mxu0 %v531
      %588 = vmatprep.subr.mxu0 %v534
      %589 = vmatpush1.msra.mxu0 %v533
      %590 = vmatprep.subr.mxu0 0.0
      %591 = vmatpush1.msra.mxu0 0.0
      %592 = vmatprep.subr.mxu0 0.0
      %593 = vmatpush1.msra.mxu0 0.0
      %594 = vmatprep.subr.mxu0 0.0
      %595 = vmatpush1.msra.mxu0 0.0
      %596 = vmatprep.subr.mxu0 0.0
      %597 = vmatpush1.msra.mxu0 0.0
      %598 = vmatprep.subr.mxu0 0.0
      %599 = vmatpush1.msra.mxu0 0.0
      %600 = vmatprep.subr.mxu0 0.0
      %601 = vmatpush1.msra.mxu0 0.0
      %602 = vmatprep.subr.mxu0 0.0
      %603 = vmatpush1.msra.mxu0 0.0
      %604 = vmatprep.subr.mxu0 0.0
      %605 = vmatpush1.msra.mxu0 0.0
      %606 = vmatprep.subr.mxu0 0.0
      %607 = vmatpush1.msra.mxu0 0.0
      %608 = vmatprep.subr.mxu0 0.0
      %609 = vmatpush1.msra.mxu0 0.0
      %610 = vmatprep.subr.mxu0 0.0
      %611 = vmatpush1.msra.mxu0 0.0
      %612 = vmatprep.subr.mxu0 0.0
      %613 = vmatpush1.msra.mxu0 0.0
      %614 = vmatprep.subr.mxu0 0.0
      %615 = vmatpush1.msra.mxu0 0.0
      %616 = vmatprep.subr.mxu0 0.0
      %617 = vmatpush1.msra.mxu0 0.0
      %618 = vmatprep.subr.mxu0 0.0
      %619 = vmatpush1.msra.mxu0 0.0
      %620 = vmatprep.subr.mxu0 0.0
      %621 = vmatpush1.msra.mxu0 0.0
      %622 = vmatprep.subr.mxu0 0.0
      %623 = vmatpush1.msra.mxu0 0.0
      %624 = vmatprep.subr.mxu0 0.0
      %625 = vmatpush1.msra.mxu0 0.0
      %626 = vmatprep.subr.mxu0 0.0
      %627 = vmatpush1.msra.mxu0 0.0
      %628 = vmatprep.subr.mxu0 0.0
      %629 = vmatpush1.msra.mxu0 0.0
      %630 = vmatprep.subr.mxu0 0.0
      %631 = vmatpush1.msra.mxu0 0.0
      %632 = vmatprep.subr.mxu0 0.0
      %633 = vmatpush1.msra.mxu0 0.0
      %634 = vmatprep.subr.mxu0 0.0
      %635 = vmatpush1.msra.mxu0 0.0
      %636 = vmatprep.mubr.f32.mxu0 0.0
      %637 = vmatmul.mubr.f32.gmra.mrb[0].mxu0 %v561
      %v638 = vpop.f32.mrb[0].mxu0
      %v639 = vadd.f32 %v542, %v638
      %v640 = vpop.f32.mrb[0].mxu0
      %v641 = vadd.f32 %v542, %v640
      %642 = vmatprep.mubr.f32.mxu0 0.0
      %643 = vmatmul.mubr.f32.gmra.mrb[0].mxu0 %v564
      %v644 = vpop.f32.mrb[0].mxu0
      %v645 = vadd.f32 %v547, %v644
      %v646 = vpop.f32.mrb[0].mxu0
      %v647 = vadd.f32 %v547, %v646
      %648 = vmatprep.mubr.f32.mxu0 0.0
      %649 = vmatmul.mubr.f32.gmra.mrb[0].mxu0 %v567
      %v650 = vpop.f32.mrb[0].mxu0
      %v651 = vadd.f32 %v552, %v650
      %v652 = vpop.f32.mrb[0].mxu0
      %v653 = vadd.f32 %v552, %v652
      %654 = vmatprep.mubr.f32.mxu0 0.0
      %655 = vmatmul.mubr.f32.gmra.mrb[0].mxu0 %v570
      %v656 = vpop.f32.mrb[0].mxu0
      %v657 = vadd.f32 %v557, %v656
      %v658 = vpop.f32.mrb[0].mxu0
      %v659 = vadd.f32 %v557, %v658
      %660 = vdwg.mxu0
      %v661 = vmax.f32 %v639, 0.0
      %v662 = vmax.f32 %v641, 0.0
      %v663 = vmax.f32 %v645, 0.0
      %v664 = vmax.f32 %v647, 0.0
      %v665 = vmax.f32 %v651, 0.0
      %v666 = vmax.f32 %v653, 0.0
      %v667 = vmax.f32 %v657, 0.0
      %v668 = vmax.f32 %v659, 0.0
      %669 = vst.msk [vmem:[#allocation4] sm:$0xff] %vm314, 0.0
      %670 = vst.msk [vmem:[#allocation4 + $0x18] sm:$0xff] %vm314, 0.0
      %671 = vst.msk [vmem:[#allocation4 + $0x30] sm:$0xff] %vm314, 0.0
      %672 = vst.msk [vmem:[#allocation4 + $0x48] sm:$0xff] %vm314, 0.0
      %673 = vst.msk [vmem:[#allocation4 + $0x10] sm:$0xff] %vm316, 0.0
      %674 = vst.msk [vmem:[#allocation4 + $0x28] sm:$0xff] %vm316, 0.0
      %675 = vst.msk [vmem:[#allocation4 + $0x40] sm:$0xff] %vm316, 0.0
      %676 = vst.msk [vmem:[#allocation4 + $0x58] sm:$0xff] %vm316, 0.0
      %685 = vrot.lane.b32.xlu0 %v661, 17
      %v686 = vpop.permute.xlu0 %685
      %687 = vrot.lane.b32.xlu0 %v662, 17
      %v688 = vpop.permute.xlu0 %687
      %689 = vrot.lane.b32.xlu0 %v663, 17
      %v690 = vpop.permute.xlu0 %689
      %691 = vrot.lane.b32.xlu0 %v664, 17
      %v692 = vpop.permute.xlu0 %691
      %693 = vrot.lane.b32.xlu0 %v665, 17
      %v694 = vpop.permute.xlu0 %693
      %695 = vrot.lane.b32.xlu0 %v666, 17
      %v696 = vpop.permute.xlu0 %695
      %697 = vrot.lane.b32.xlu0 %v667, 17
      %v698 = vpop.permute.xlu0 %697
      %699 = vrot.lane.b32.xlu0 %v668, 17
      %v700 = vpop.permute.xlu0 %699
      %v701 = vsel %vm314, %v686, %v688
      %v702 = vsel %vm314, %v690, %v692
      %v703 = vsel %vm314, %v694, %v696
      %v704 = vsel %vm314, %v698, %v700
      %vm717 = vcmask 1047688
      %718 = vst.msk [vmem:[#allocation4] sm:$0xff] %vm717, %v686
      %719 = vst [vmem:[#allocation4 + $0x8] sm:$0xff] %v701
      %720 = vst.msk [vmem:[#allocation4 + $0x10] sm:$0xff] %vm314, %v688
      %721 = vst.msk [vmem:[#allocation4 + $0x18] sm:$0xff] %vm717, %v690
      %722 = vst [vmem:[#allocation4 + $0x20] sm:$0xff] %v702
      %723 = vst.msk [vmem:[#allocation4 + $0x28] sm:$0xff] %vm314, %v692
      %724 = vst.msk [vmem:[#allocation4 + $0x30] sm:$0xff] %vm717, %v694
      %725 = vst [vmem:[#allocation4 + $0x38] sm:$0xff] %v703
      %726 = vst.msk [vmem:[#allocation4 + $0x40] sm:$0xff] %vm314, %v696
      %727 = vst.msk [vmem:[#allocation4 + $0x48] sm:$0xff] %vm717, %v698
      %728 = vst [vmem:[#allocation4 + $0x50] sm:$0xff] %v704
      %729 = vst.msk [vmem:[#allocation4 + $0x58] sm:$0xff] %vm314, %v700
      %v730 = vld [vmem:[#allocation4] sm:$0xff]
      %v731 = vld [vmem:[#allocation4 + $0x8] sm:$0xff]
      %v732 = vld [vmem:[#allocation4 + $0x18] sm:$0xff]
      %v733 = vld [vmem:[#allocation4 + $0x20] sm:$0xff]
      %v734 = vld [vmem:[#allocation4 + $0x30] sm:$0xff]
      %v735 = vld [vmem:[#allocation4 + $0x38] sm:$0xff]
      %v736 = vld [vmem:[#allocation4 + $0x48] sm:$0xff]
      %v737 = vld [vmem:[#allocation4 + $0x50] sm:$0xff]
      %v738 = vsel %vm341, %v730, 0.0
      %v739 = vsel %vm342, %v731, 0.0
      %v740 = vsel %vm341, %v732, 0.0
      %v741 = vsel %vm342, %v733, 0.0
      %v742 = vsel %vm341, %v734, 0.0
      %v743 = vsel %vm342, %v735, 0.0
      %v744 = vsel %vm341, %v736, 0.0
      %v745 = vsel %vm342, %v737, 0.0
      %746 = vst [vmem:[#allocation5] sm:$0xff] %v738
      %747 = vst [vmem:[#allocation5 + $0x8] sm:$0xff] %v739
      %748 = vst [vmem:[#allocation5 + $0x10] sm:$0xff] %v740
      %749 = vst [vmem:[#allocation5 + $0x18] sm:$0xff] %v741
      %750 = vst [vmem:[#allocation5 + $0x20] sm:$0xff] %v742
      %751 = vst [vmem:[#allocation5 + $0x28] sm:$0xff] %v743
      %752 = vst [vmem:[#allocation5 + $0x30] sm:$0xff] %v744
      %753 = vst [vmem:[#allocation5 + $0x38] sm:$0xff] %v745
      %v754 = vld [vmem:[#allocation4] sm:$0xff]
      %v755 = vld [vmem:[#allocation4 + $0x8] sm:$0xff]
      %v756 = vld [vmem:[#allocation4 + $0x10] sm:$0xff]
      %v757 = vld [vmem:[#allocation4 + $0x18] sm:$0xff]
      %v758 = vld [vmem:[#allocation4 + $0x20] sm:$0xff]
      %v759 = vld [vmem:[#allocation4 + $0x28] sm:$0xff]
      %v760 = vld [vmem:[#allocation4 + $0x30] sm:$0xff]
      %v761 = vld [vmem:[#allocation4 + $0x38] sm:$0xff]
      %v762 = vld [vmem:[#allocation4 + $0x40] sm:$0xff]
      %v763 = vld [vmem:[#allocation4 + $0x48] sm:$0xff]
      %v764 = vld [vmem:[#allocation4 + $0x50] sm:$0xff]
      %v765 = vld [vmem:[#allocation4 + $0x58] sm:$0xff]
      %778 = vrot.lane.b32.xlu0 %v754, 127
      %v779 = vpop.permute.xlu0 %778
      %780 = vrot.lane.b32.xlu0 %v755, 127
      %v781 = vpop.permute.xlu0 %780
      %782 = vrot.lane.b32.xlu0 %v756, 127
      %v783 = vpop.permute.xlu0 %782
      %784 = vrot.lane.b32.xlu0 %v757, 127
      %v785 = vpop.permute.xlu0 %784
      %786 = vrot.lane.b32.xlu0 %v758, 127
      %v787 = vpop.permute.xlu0 %786
      %788 = vrot.lane.b32.xlu0 %v759, 127
      %v789 = vpop.permute.xlu0 %788
      %790 = vrot.lane.b32.xlu0 %v760, 127
      %v791 = vpop.permute.xlu0 %790
      %792 = vrot.lane.b32.xlu0 %v761, 127
      %v793 = vpop.permute.xlu0 %792
      %794 = vrot.lane.b32.xlu0 %v762, 127
      %v795 = vpop.permute.xlu0 %794
      %796 = vrot.lane.b32.xlu0 %v763, 127
      %v797 = vpop.permute.xlu0 %796
      %798 = vrot.lane.b32.xlu0 %v764, 127
      %v799 = vpop.permute.xlu0 %798
      %800 = vrot.lane.b32.xlu0 %v765, 127
      %v801 = vpop.permute.xlu0 %800
      %v802 = vsel %vm359, %v779, %v781
      %v803 = vsel %vm359, %v781, %v783
      %v804 = vsel %vm359, %v785, %v787
      %v805 = vsel %vm359, %v787, %v789
      %v806 = vsel %vm359, %v791, %v793
      %v807 = vsel %vm359, %v793, %v795
      %v808 = vsel %vm359, %v797, %v799
      %v809 = vsel %vm359, %v799, %v801
      %818 = vst [vmem:[#allocation5 + $0x40] sm:$0xff] %v802
      %819 = vst [vmem:[#allocation5 + $0x48] sm:$0xff] %v803
      %820 = vst [vmem:[#allocation5 + $0x50] sm:$0xff] %v804
      %821 = vst [vmem:[#allocation5 + $0x58] sm:$0xff] %v805
      %822 = vst [vmem:[#allocation5 + $0x60] sm:$0xff] %v806
      %823 = vst [vmem:[#allocation5 + $0x68] sm:$0xff] %v807
      %824 = vst [vmem:[#allocation5 + $0x70] sm:$0xff] %v808
      %825 = vst [vmem:[#allocation5 + $0x78] sm:$0xff] %v809
      %v826 = vld [vmem:[#allocation4] sm:$0xff]
      %v827 = vld [vmem:[#allocation4 + $0x8] sm:$0xff]
      %v828 = vld [vmem:[#allocation4 + $0x10] sm:$0xff]
      %v829 = vld [vmem:[#allocation4 + $0x18] sm:$0xff]
      %v830 = vld [vmem:[#allocation4 + $0x20] sm:$0xff]
      %v831 = vld [vmem:[#allocation4 + $0x28] sm:$0xff]
      %v832 = vld [vmem:[#allocation4 + $0x30] sm:$0xff]
      %v833 = vld [vmem:[#allocation4 + $0x38] sm:$0xff]
      %v834 = vld [vmem:[#allocation4 + $0x40] sm:$0xff]
      %v835 = vld [vmem:[#allocation4 + $0x48] sm:$0xff]
      %v836 = vld [vmem:[#allocation4 + $0x50] sm:$0xff]
      %v837 = vld [vmem:[#allocation4 + $0x58] sm:$0xff]
      %850 = vrot.lane.b32.xlu0 %v826, 126
      %v851 = vpop.permute.xlu0 %850
      %852 = vrot.lane.b32.xlu0 %v827, 126
      %v853 = vpop.permute.xlu0 %852
      %854 = vrot.lane.b32.xlu0 %v828, 126
      %v855 = vpop.permute.xlu0 %854
      %856 = vrot.lane.b32.xlu0 %v829, 126
      %v857 = vpop.permute.xlu0 %856
      %858 = vrot.lane.b32.xlu0 %v830, 126
      %v859 = vpop.permute.xlu0 %858
      %860 = vrot.lane.b32.xlu0 %v831, 126
      %v861 = vpop.permute.xlu0 %860
      %862 = vrot.lane.b32.xlu0 %v832, 126
      %v863 = vpop.permute.xlu0 %862
      %864 = vrot.lane.b32.xlu0 %v833, 126
      %v865 = vpop.permute.xlu0 %864
      %866 = vrot.lane.b32.xlu0 %v834, 126
      %v867 = vpop.permute.xlu0 %866
      %868 = vrot.lane.b32.xlu0 %v835, 126
      %v869 = vpop.permute.xlu0 %868
      %870 = vrot.lane.b32.xlu0 %v836, 126
      %v871 = vpop.permute.xlu0 %870
      %872 = vrot.lane.b32.xlu0 %v837, 126
      %v873 = vpop.permute.xlu0 %872
      %v874 = vsel %vm382, %v851, %v853
      %v875 = vsel %vm382, %v853, %v855
      %v876 = vsel %vm382, %v857, %v859
      %v877 = vsel %vm382, %v859, %v861
      %v878 = vsel %vm382, %v863, %v865
      %v879 = vsel %vm382, %v865, %v867
      %v880 = vsel %vm382, %v869, %v871
      %v881 = vsel %vm382, %v871, %v873
      %v890 = vsel %vm371, %v874, 0.0
      %v891 = vsel %vm372, %v875, 0.0
      %v892 = vsel %vm371, %v876, 0.0
      %v893 = vsel %vm372, %v877, 0.0
      %v894 = vsel %vm371, %v878, 0.0
      %v895 = vsel %vm372, %v879, 0.0
      %v896 = vsel %vm371, %v880, 0.0
      %v897 = vsel %vm372, %v881, 0.0
      %898 = vst [vmem:[#allocation5 + $0x80] sm:$0xff] %v890
      %899 = vst [vmem:[#allocation5 + $0x88] sm:$0xff] %v891
      %900 = vst [vmem:[#allocation5 + $0x90] sm:$0xff] %v892
      %901 = vst [vmem:[#allocation5 + $0x98] sm:$0xff] %v893
      %902 = vst [vmem:[#allocation5 + $0xa0] sm:$0xff] %v894
      %903 = vst [vmem:[#allocation5 + $0xa8] sm:$0xff] %v895
      %904 = vst [vmem:[#allocation5 + $0xb0] sm:$0xff] %v896
      %905 = vst [vmem:[#allocation5 + $0xb8] sm:$0xff] %v897
      %v906 = vld [vmem:[#allocation4] sm:$0xff]
      %v907 = vld [vmem:[#allocation4 + $0x8] sm:$0xff]
      %v908 = vld [vmem:[#allocation4 + $0x10] sm:$0xff]
      %v909 = vld [vmem:[#allocation4 + $0x18] sm:$0xff]
      %v910 = vld [vmem:[#allocation4 + $0x20] sm:$0xff]
      %v911 = vld [vmem:[#allocation4 + $0x28] sm:$0xff]
      %v912 = vld [vmem:[#allocation4 + $0x30] sm:$0xff]
      %v913 = vld [vmem:[#allocation4 + $0x38] sm:$0xff]
      %v914 = vld [vmem:[#allocation4 + $0x40] sm:$0xff]
      %v915 = vld [vmem:[#allocation4 + $0x48] sm:$0xff]
      %v916 = vld [vmem:[#allocation4 + $0x50] sm:$0xff]
      %v917 = vld [vmem:[#allocation4 + $0x58] sm:$0xff]
      %930 = vrot.lane.b32.xlu0 %v906, 112
      %v931 = vpop.permute.xlu0 %930
      %932 = vrot.lane.b32.xlu0 %v907, 112
      %v933 = vpop.permute.xlu0 %932
      %934 = vrot.lane.b32.xlu0 %v908, 112
      %v935 = vpop.permute.xlu0 %934
      %936 = vrot.lane.b32.xlu0 %v909, 112
      %v937 = vpop.permute.xlu0 %936
      %938 = vrot.lane.b32.xlu0 %v910, 112
      %v939 = vpop.permute.xlu0 %938
      %940 = vrot.lane.b32.xlu0 %v911, 112
      %v941 = vpop.permute.xlu0 %940
      %942 = vrot.lane.b32.xlu0 %v912, 112
      %v943 = vpop.permute.xlu0 %942
      %944 = vrot.lane.b32.xlu0 %v913, 112
      %v945 = vpop.permute.xlu0 %944
      %946 = vrot.lane.b32.xlu0 %v914, 112
      %v947 = vpop.permute.xlu0 %946
      %948 = vrot.lane.b32.xlu0 %v915, 112
      %v949 = vpop.permute.xlu0 %948
      %950 = vrot.lane.b32.xlu0 %v916, 112
      %v951 = vpop.permute.xlu0 %950
      %952 = vrot.lane.b32.xlu0 %v917, 112
      %v953 = vpop.permute.xlu0 %952
      %v954 = vsel %vm403, %v931, %v933
      %v955 = vsel %vm403, %v933, %v935
      %v956 = vsel %vm403, %v937, %v939
      %v957 = vsel %vm403, %v939, %v941
      %v958 = vsel %vm403, %v943, %v945
      %v959 = vsel %vm403, %v945, %v947
      %v960 = vsel %vm403, %v949, %v951
      %v961 = vsel %vm403, %v951, %v953
      %v970 = vsel %vm341, %v954, 0.0
      %v971 = vsel %vm342, %v955, 0.0
      %v972 = vsel %vm341, %v956, 0.0
      %v973 = vsel %vm342, %v957, 0.0
      %v974 = vsel %vm341, %v958, 0.0
      %v975 = vsel %vm342, %v959, 0.0
      %v976 = vsel %vm341, %v960, 0.0
      %v977 = vsel %vm342, %v961, 0.0
      %978 = vst [vmem:[#allocation5 + $0xc0] sm:$0xff] %v970
      %979 = vst [vmem:[#allocation5 + $0xc8] sm:$0xff] %v971
      %980 = vst [vmem:[#allocation5 + $0xd0] sm:$0xff] %v972
      %981 = vst [vmem:[#allocation5 + $0xd8] sm:$0xff] %v973
      %982 = vst [vmem:[#allocation5 + $0xe0] sm:$0xff] %v974
      %983 = vst [vmem:[#allocation5 + $0xe8] sm:$0xff] %v975
      %984 = vst [vmem:[#allocation5 + $0xf0] sm:$0xff] %v976
      %985 = vst [vmem:[#allocation5 + $0xf8] sm:$0xff] %v977
      %v986 = vld [vmem:[#allocation4] sm:$0xff]
      %v987 = vld [vmem:[#allocation4 + $0x8] sm:$0xff]
      %v988 = vld [vmem:[#allocation4 + $0x10] sm:$0xff]
      %v989 = vld [vmem:[#allocation4 + $0x18] sm:$0xff]
      %v990 = vld [vmem:[#allocation4 + $0x20] sm:$0xff]
      %v991 = vld [vmem:[#allocation4 + $0x28] sm:$0xff]
      %v992 = vld [vmem:[#allocation4 + $0x30] sm:$0xff]
      %v993 = vld [vmem:[#allocation4 + $0x38] sm:$0xff]
      %v994 = vld [vmem:[#allocation4 + $0x40] sm:$0xff]
      %v995 = vld [vmem:[#allocation4 + $0x48] sm:$0xff]
      %v996 = vld [vmem:[#allocation4 + $0x50] sm:$0xff]
      %v997 = vld [vmem:[#allocation4 + $0x58] sm:$0xff]
      %1010 = vrot.lane.b32.xlu0 %v986, 111
      %v1011 = vpop.permute.xlu0 %1010
      %1012 = vrot.lane.b32.xlu0 %v987, 111
      %v1013 = vpop.permute.xlu0 %1012
      %1014 = vrot.lane.b32.xlu0 %v988, 111
      %v1015 = vpop.permute.xlu0 %1014
      %1016 = vrot.lane.b32.xlu0 %v989, 111
      %v1017 = vpop.permute.xlu0 %1016
      %1018 = vrot.lane.b32.xlu0 %v990, 111
      %v1019 = vpop.permute.xlu0 %1018
      %1020 = vrot.lane.b32.xlu0 %v991, 111
      %v1021 = vpop.permute.xlu0 %1020
      %1022 = vrot.lane.b32.xlu0 %v992, 111
      %v1023 = vpop.permute.xlu0 %1022
      %1024 = vrot.lane.b32.xlu0 %v993, 111
      %v1025 = vpop.permute.xlu0 %1024
      %1026 = vrot.lane.b32.xlu0 %v994, 111
      %v1027 = vpop.permute.xlu0 %1026
      %1028 = vrot.lane.b32.xlu0 %v995, 111
      %v1029 = vpop.permute.xlu0 %1028
      %1030 = vrot.lane.b32.xlu0 %v996, 111
      %v1031 = vpop.permute.xlu0 %1030
      %1032 = vrot.lane.b32.xlu0 %v997, 111
      %v1033 = vpop.permute.xlu0 %1032
      %v1034 = vsel %vm424, %v1011, %v1013
      %v1035 = vsel %vm424, %v1013, %v1015
      %v1036 = vsel %vm424, %v1017, %v1019
      %v1037 = vsel %vm424, %v1019, %v1021
      %v1038 = vsel %vm424, %v1023, %v1025
      %v1039 = vsel %vm424, %v1025, %v1027
      %v1040 = vsel %vm424, %v1029, %v1031
      %v1041 = vsel %vm424, %v1031, %v1033
      %1050 = vst [vmem:[#allocation5 + $0x100] sm:$0xff] %v1034
      %1051 = vst [vmem:[#allocation5 + $0x108] sm:$0xff] %v1035
      %1052 = vst [vmem:[#allocation5 + $0x110] sm:$0xff] %v1036
      %1053 = vst [vmem:[#allocation5 + $0x118] sm:$0xff] %v1037
      %1054 = vst [vmem:[#allocation5 + $0x120] sm:$0xff] %v1038
      %1055 = vst [vmem:[#allocation5 + $0x128] sm:$0xff] %v1039
      %1056 = vst [vmem:[#allocation5 + $0x130] sm:$0xff] %v1040
      %1057 = vst [vmem:[#allocation5 + $0x138] sm:$0xff] %v1041
      %v1058 = vld [vmem:[#allocation4] sm:$0xff]
      %v1059 = vld [vmem:[#allocation4 + $0x8] sm:$0xff]
      %v1060 = vld [vmem:[#allocation4 + $0x10] sm:$0xff]
      %v1061 = vld [vmem:[#allocation4 + $0x18] sm:$0xff]
      %v1062 = vld [vmem:[#allocation4 + $0x20] sm:$0xff]
      %v1063 = vld [vmem:[#allocation4 + $0x28] sm:$0xff]
      %v1064 = vld [vmem:[#allocation4 + $0x30] sm:$0xff]
      %v1065 = vld [vmem:[#allocation4 + $0x38] sm:$0xff]
      %v1066 = vld [vmem:[#allocation4 + $0x40] sm:$0xff]
      %v1067 = vld [vmem:[#allocation4 + $0x48] sm:$0xff]
      %v1068 = vld [vmem:[#allocation4 + $0x50] sm:$0xff]
      %v1069 = vld [vmem:[#allocation4 + $0x58] sm:$0xff]
      %1082 = vrot.lane.b32.xlu0 %v1058, 110
      %v1083 = vpop.permute.xlu0 %1082
      %1084 = vrot.lane.b32.xlu0 %v1059, 110
      %v1085 = vpop.permute.xlu0 %1084
      %1086 = vrot.lane.b32.xlu0 %v1060, 110
      %v1087 = vpop.permute.xlu0 %1086
      %1088 = vrot.lane.b32.xlu0 %v1061, 110
      %v1089 = vpop.permute.xlu0 %1088
      %1090 = vrot.lane.b32.xlu0 %v1062, 110
      %v1091 = vpop.permute.xlu0 %1090
      %1092 = vrot.lane.b32.xlu0 %v1063, 110
      %v1093 = vpop.permute.xlu0 %1092
      %1094 = vrot.lane.b32.xlu0 %v1064, 110
      %v1095 = vpop.permute.xlu0 %1094
      %1096 = vrot.lane.b32.xlu0 %v1065, 110
      %v1097 = vpop.permute.xlu0 %1096
      %1098 = vrot.lane.b32.xlu0 %v1066, 110
      %v1099 = vpop.permute.xlu0 %1098
      %1100 = vrot.lane.b32.xlu0 %v1067, 110
      %v1101 = vpop.permute.xlu0 %1100
      %1102 = vrot.lane.b32.xlu0 %v1068, 110
      %v1103 = vpop.permute.xlu0 %1102
      %1104 = vrot.lane.b32.xlu0 %v1069, 110
      %v1105 = vpop.permute.xlu0 %1104
      %v1106 = vsel %vm443, %v1083, %v1085
      %v1107 = vsel %vm443, %v1085, %v1087
      %v1108 = vsel %vm443, %v1089, %v1091
      %v1109 = vsel %vm443, %v1091, %v1093
      %v1110 = vsel %vm443, %v1095, %v1097
      %v1111 = vsel %vm443, %v1097, %v1099
      %v1112 = vsel %vm443, %v1101, %v1103
      %v1113 = vsel %vm443, %v1103, %v1105
      %v1122 = vsel %vm371, %v1106, 0.0
      %v1123 = vsel %vm372, %v1107, 0.0
      %v1124 = vsel %vm371, %v1108, 0.0
      %v1125 = vsel %vm372, %v1109, 0.0
      %v1126 = vsel %vm371, %v1110, 0.0
      %v1127 = vsel %vm372, %v1111, 0.0
      %v1128 = vsel %vm371, %v1112, 0.0
      %v1129 = vsel %vm372, %v1113, 0.0
      %1130 = vst [vmem:[#allocation5 + $0x140] sm:$0xff] %v1122
      %1131 = vst [vmem:[#allocation5 + $0x148] sm:$0xff] %v1123
      %1132 = vst [vmem:[#allocation5 + $0x150] sm:$0xff] %v1124
      %1133 = vst [vmem:[#allocation5 + $0x158] sm:$0xff] %v1125
      %1134 = vst [vmem:[#allocation5 + $0x160] sm:$0xff] %v1126
      %1135 = vst [vmem:[#allocation5 + $0x168] sm:$0xff] %v1127
      %1136 = vst [vmem:[#allocation5 + $0x170] sm:$0xff] %v1128
      %1137 = vst [vmem:[#allocation5 + $0x178] sm:$0xff] %v1129
      %v1138 = vld [vmem:[#allocation4] sm:$0xff]
      %v1139 = vld [vmem:[#allocation4 + $0x8] sm:$0xff]
      %v1140 = vld [vmem:[#allocation4 + $0x10] sm:$0xff]
      %v1141 = vld [vmem:[#allocation4 + $0x18] sm:$0xff]
      %v1142 = vld [vmem:[#allocation4 + $0x20] sm:$0xff]
      %v1143 = vld [vmem:[#allocation4 + $0x28] sm:$0xff]
      %v1144 = vld [vmem:[#allocation4 + $0x30] sm:$0xff]
      %v1145 = vld [vmem:[#allocation4 + $0x38] sm:$0xff]
      %v1146 = vld [vmem:[#allocation4 + $0x40] sm:$0xff]
      %v1147 = vld [vmem:[#allocation4 + $0x48] sm:$0xff]
      %v1148 = vld [vmem:[#allocation4 + $0x50] sm:$0xff]
      %v1149 = vld [vmem:[#allocation4 + $0x58] sm:$0xff]
      %1162 = vrot.lane.b32.xlu0 %v1138, 96
      %v1163 = vpop.permute.xlu0 %1162
      %1164 = vrot.lane.b32.xlu0 %v1139, 96
      %v1165 = vpop.permute.xlu0 %1164
      %1166 = vrot.lane.b32.xlu0 %v1140, 96
      %v1167 = vpop.permute.xlu0 %1166
      %1168 = vrot.lane.b32.xlu0 %v1141, 96
      %v1169 = vpop.permute.xlu0 %1168
      %1170 = vrot.lane.b32.xlu0 %v1142, 96
      %v1171 = vpop.permute.xlu0 %1170
      %1172 = vrot.lane.b32.xlu0 %v1143, 96
      %v1173 = vpop.permute.xlu0 %1172
      %1174 = vrot.lane.b32.xlu0 %v1144, 96
      %v1175 = vpop.permute.xlu0 %1174
      %1176 = vrot.lane.b32.xlu0 %v1145, 96
      %v1177 = vpop.permute.xlu0 %1176
      %1178 = vrot.lane.b32.xlu0 %v1146, 96
      %v1179 = vpop.permute.xlu0 %1178
      %1180 = vrot.lane.b32.xlu0 %v1147, 96
      %v1181 = vpop.permute.xlu0 %1180
      %1182 = vrot.lane.b32.xlu0 %v1148, 96
      %v1183 = vpop.permute.xlu0 %1182
      %1184 = vrot.lane.b32.xlu0 %v1149, 96
      %v1185 = vpop.permute.xlu0 %1184
      %v1186 = vsel %vm464, %v1163, %v1165
      %v1187 = vsel %vm464, %v1165, %v1167
      %v1188 = vsel %vm464, %v1169, %v1171
      %v1189 = vsel %vm464, %v1171, %v1173
      %v1190 = vsel %vm464, %v1175, %v1177
      %v1191 = vsel %vm464, %v1177, %v1179
      %v1192 = vsel %vm464, %v1181, %v1183
      %v1193 = vsel %vm464, %v1183, %v1185
      %v1202 = vsel %vm341, %v1186, 0.0
      %v1203 = vsel %vm342, %v1187, 0.0
      %v1204 = vsel %vm341, %v1188, 0.0
      %v1205 = vsel %vm342, %v1189, 0.0
      %v1206 = vsel %vm341, %v1190, 0.0
      %v1207 = vsel %vm342, %v1191, 0.0
      %v1208 = vsel %vm341, %v1192, 0.0
      %v1209 = vsel %vm342, %v1193, 0.0
      %1210 = vst [vmem:[#allocation5 + $0x180] sm:$0xff] %v1202
      %1211 = vst [vmem:[#allocation5 + $0x188] sm:$0xff] %v1203
      %1212 = vst [vmem:[#allocation5 + $0x190] sm:$0xff] %v1204
      %1213 = vst [vmem:[#allocation5 + $0x198] sm:$0xff] %v1205
      %1214 = vst [vmem:[#allocation5 + $0x1a0] sm:$0xff] %v1206
      %1215 = vst [vmem:[#allocation5 + $0x1a8] sm:$0xff] %v1207
      %1216 = vst [vmem:[#allocation5 + $0x1b0] sm:$0xff] %v1208
      %1217 = vst [vmem:[#allocation5 + $0x1b8] sm:$0xff] %v1209
      %v1218 = vld [vmem:[#allocation4] sm:$0xff]
      %v1219 = vld [vmem:[#allocation4 + $0x8] sm:$0xff]
      %v1220 = vld [vmem:[#allocation4 + $0x10] sm:$0xff]
      %v1221 = vld [vmem:[#allocation4 + $0x18] sm:$0xff]
      %v1222 = vld [vmem:[#allocation4 + $0x20] sm:$0xff]
      %v1223 = vld [vmem:[#allocation4 + $0x28] sm:$0xff]
      %v1224 = vld [vmem:[#allocation4 + $0x30] sm:$0xff]
      %v1225 = vld [vmem:[#allocation4 + $0x38] sm:$0xff]
      %v1226 = vld [vmem:[#allocation4 + $0x40] sm:$0xff]
      %v1227 = vld [vmem:[#allocation4 + $0x48] sm:$0xff]
      %v1228 = vld [vmem:[#allocation4 + $0x50] sm:$0xff]
      %v1229 = vld [vmem:[#allocation4 + $0x58] sm:$0xff]
      %1242 = vrot.lane.b32.xlu0 %v1218, 95
      %v1243 = vpop.permute.xlu0 %1242
      %1244 = vrot.lane.b32.xlu0 %v1219, 95
      %v1245 = vpop.permute.xlu0 %1244
      %1246 = vrot.lane.b32.xlu0 %v1220, 95
      %v1247 = vpop.permute.xlu0 %1246
      %1248 = vrot.lane.b32.xlu0 %v1221, 95
      %v1249 = vpop.permute.xlu0 %1248
      %1250 = vrot.lane.b32.xlu0 %v1222, 95
      %v1251 = vpop.permute.xlu0 %1250
      %1252 = vrot.lane.b32.xlu0 %v1223, 95
      %v1253 = vpop.permute.xlu0 %1252
      %1254 = vrot.lane.b32.xlu0 %v1224, 95
      %v1255 = vpop.permute.xlu0 %1254
      %1256 = vrot.lane.b32.xlu0 %v1225, 95
      %v1257 = vpop.permute.xlu0 %1256
      %1258 = vrot.lane.b32.xlu0 %v1226, 95
      %v1259 = vpop.permute.xlu0 %1258
      %1260 = vrot.lane.b32.xlu0 %v1227, 95
      %v1261 = vpop.permute.xlu0 %1260
      %1262 = vrot.lane.b32.xlu0 %v1228, 95
      %v1263 = vpop.permute.xlu0 %1262
      %1264 = vrot.lane.b32.xlu0 %v1229, 95
      %v1265 = vpop.permute.xlu0 %1264
      %v1266 = vsel %vm485, %v1243, %v1245
      %v1267 = vsel %vm485, %v1245, %v1247
      %v1268 = vsel %vm485, %v1249, %v1251
      %v1269 = vsel %vm485, %v1251, %v1253
      %v1270 = vsel %vm485, %v1255, %v1257
      %v1271 = vsel %vm485, %v1257, %v1259
      %v1272 = vsel %vm485, %v1261, %v1263
      %v1273 = vsel %vm485, %v1263, %v1265
      %1282 = vst [vmem:[#allocation5 + $0x1c0] sm:$0xff] %v1266
      %1283 = vst [vmem:[#allocation5 + $0x1c8] sm:$0xff] %v1267
      %1284 = vst [vmem:[#allocation5 + $0x1d0] sm:$0xff] %v1268
      %1285 = vst [vmem:[#allocation5 + $0x1d8] sm:$0xff] %v1269
      %1286 = vst [vmem:[#allocation5 + $0x1e0] sm:$0xff] %v1270
      %1287 = vst [vmem:[#allocation5 + $0x1e8] sm:$0xff] %v1271
      %1288 = vst [vmem:[#allocation5 + $0x1f0] sm:$0xff] %v1272
      %1289 = vst [vmem:[#allocation5 + $0x1f8] sm:$0xff] %v1273
      %v1290 = vld [vmem:[#allocation4] sm:$0xff]
      %v1291 = vld [vmem:[#allocation4 + $0x8] sm:$0xff]
      %v1292 = vld [vmem:[#allocation4 + $0x10] sm:$0xff]
      %v1293 = vld [vmem:[#allocation4 + $0x18] sm:$0xff]
      %v1294 = vld [vmem:[#allocation4 + $0x20] sm:$0xff]
      %v1295 = vld [vmem:[#allocation4 + $0x28] sm:$0xff]
      %v1296 = vld [vmem:[#allocation4 + $0x30] sm:$0xff]
      %v1297 = vld [vmem:[#allocation4 + $0x38] sm:$0xff]
      %v1298 = vld [vmem:[#allocation4 + $0x40] sm:$0xff]
      %v1299 = vld [vmem:[#allocation4 + $0x48] sm:$0xff]
      %v1300 = vld [vmem:[#allocation4 + $0x50] sm:$0xff]
      %v1301 = vld [vmem:[#allocation4 + $0x58] sm:$0xff]
      %1314 = vrot.lane.b32.xlu0 %v1290, 94
      %v1315 = vpop.permute.xlu0 %1314
      %1316 = vrot.lane.b32.xlu0 %v1291, 94
      %v1317 = vpop.permute.xlu0 %1316
      %1318 = vrot.lane.b32.xlu0 %v1292, 94
      %v1319 = vpop.permute.xlu0 %1318
      %1320 = vrot.lane.b32.xlu0 %v1293, 94
      %v1321 = vpop.permute.xlu0 %1320
      %1322 = vrot.lane.b32.xlu0 %v1294, 94
      %v1323 = vpop.permute.xlu0 %1322
      %1324 = vrot.lane.b32.xlu0 %v1295, 94
      %v1325 = vpop.permute.xlu0 %1324
      %1326 = vrot.lane.b32.xlu0 %v1296, 94
      %v1327 = vpop.permute.xlu0 %1326
      %1328 = vrot.lane.b32.xlu0 %v1297, 94
      %v1329 = vpop.permute.xlu0 %1328
      %1330 = vrot.lane.b32.xlu0 %v1298, 94
      %v1331 = vpop.permute.xlu0 %1330
      %1332 = vrot.lane.b32.xlu0 %v1299, 94
      %v1333 = vpop.permute.xlu0 %1332
      %1334 = vrot.lane.b32.xlu0 %v1300, 94
      %v1335 = vpop.permute.xlu0 %1334
      %1336 = vrot.lane.b32.xlu0 %v1301, 94
      %v1337 = vpop.permute.xlu0 %1336
      %v1338 = vsel %vm504, %v1315, %v1317
      %v1339 = vsel %vm504, %v1317, %v1319
      %v1340 = vsel %vm504, %v1321, %v1323
      %v1341 = vsel %vm504, %v1323, %v1325
      %v1342 = vsel %vm504, %v1327, %v1329
      %v1343 = vsel %vm504, %v1329, %v1331
      %v1344 = vsel %vm504, %v1333, %v1335
      %v1345 = vsel %vm504, %v1335, %v1337
      %v1354 = vsel %vm371, %v1338, 0.0
      %v1355 = vsel %vm372, %v1339, 0.0
      %v1356 = vsel %vm371, %v1340, 0.0
      %v1357 = vsel %vm372, %v1341, 0.0
      %v1358 = vsel %vm371, %v1342, 0.0
      %v1359 = vsel %vm372, %v1343, 0.0
      %v1360 = vsel %vm371, %v1344, 0.0
      %v1361 = vsel %vm372, %v1345, 0.0
      %1362 = vst [vmem:[#allocation5 + $0x200] sm:$0xff] %v1354
      %1363 = vst [vmem:[#allocation5 + $0x208] sm:$0xff] %v1355
      %1364 = vst [vmem:[#allocation5 + $0x210] sm:$0xff] %v1356
      %1365 = vst [vmem:[#allocation5 + $0x218] sm:$0xff] %v1357
      %1366 = vst [vmem:[#allocation5 + $0x220] sm:$0xff] %v1358
      %1367 = vst [vmem:[#allocation5 + $0x228] sm:$0xff] %v1359
      %1368 = vst [vmem:[#allocation5 + $0x230] sm:$0xff] %v1360
      %1369 = vst [vmem:[#allocation5 + $0x238] sm:$0xff] %v1361
      %v1370 = vld [vmem:[%s4] sm:$0xff]
      %v1371 = vld [vmem:[%s4 + $0x8] sm:$0xff]
      %v1372 = vld [vmem:[%s4 + $0x10] sm:$0xff]
      %v1373 = vld [vmem:[#allocation5] sm:$0xff]
      %v1374 = vld [vmem:[#allocation5 + $0x8] sm:$0xff]
      %v1375 = vld [vmem:[#allocation5 + $0x10] sm:$0xff]
      %v1376 = vld [vmem:[#allocation5 + $0x18] sm:$0xff]
      %v1377 = vld [vmem:[#allocation5 + $0x20] sm:$0xff]
      %v1378 = vld [vmem:[#allocation5 + $0x28] sm:$0xff]
      %v1379 = vld [vmem:[#allocation5 + $0x30] sm:$0xff]
      %v1380 = vld [vmem:[#allocation5 + $0x38] sm:$0xff]
      %v1381 = vld [vmem:[#allocation5 + $0x40] sm:$0xff]
      %v1382 = vld [vmem:[#allocation5 + $0x48] sm:$0xff]
      %v1383 = vld [vmem:[#allocation5 + $0x50] sm:$0xff]
      %v1384 = vld [vmem:[#allocation5 + $0x58] sm:$0xff]
      %v1385 = vld [vmem:[#allocation5 + $0x60] sm:$0xff]
      %v1386 = vld [vmem:[#allocation5 + $0x68] sm:$0xff]
      %v1387 = vld [vmem:[#allocation5 + $0x70] sm:$0xff]
      %v1388 = vld [vmem:[#allocation5 + $0x78] sm:$0xff]
      %v1389 = vld [vmem:[#allocation5 + $0x80] sm:$0xff]
      %v1390 = vld [vmem:[#allocation5 + $0x88] sm:$0xff]
      %v1391 = vld [vmem:[#allocation5 + $0x90] sm:$0xff]
      %v1392 = vld [vmem:[#allocation5 + $0x98] sm:$0xff]
      %v1393 = vld [vmem:[#allocation5 + $0xa0] sm:$0xff]
      %v1394 = vld [vmem:[#allocation5 + $0xa8] sm:$0xff]
      %v1395 = vld [vmem:[#allocation5 + $0xb0] sm:$0xff]
      %v1396 = vld [vmem:[#allocation5 + $0xb8] sm:$0xff]
      %v1397 = vld [vmem:[#allocation5 + $0xc0] sm:$0xff]
      %v1398 = vld [vmem:[#allocation5 + $0xc8] sm:$0xff]
      %v1399 = vld [vmem:[#allocation5 + $0xd0] sm:$0xff]
      %v1400 = vld [vmem:[#allocation5 + $0xd8] sm:$0xff]
      %v1401 = vld [vmem:[#allocation5 + $0xe0] sm:$0xff]
      %v1402 = vld [vmem:[#allocation5 + $0xe8] sm:$0xff]
      %v1403 = vld [vmem:[#allocation5 + $0xf0] sm:$0xff]
      %v1404 = vld [vmem:[#allocation5 + $0xf8] sm:$0xff]
      %v1405 = vld [vmem:[#allocation5 + $0x100] sm:$0xff]
      %v1406 = vld [vmem:[#allocation5 + $0x108] sm:$0xff]
      %v1407 = vld [vmem:[#allocation5 + $0x110] sm:$0xff]
      %v1408 = vld [vmem:[#allocation5 + $0x118] sm:$0xff]
      %v1409 = vld [vmem:[#allocation5 + $0x120] sm:$0xff]
      %v1410 = vld [vmem:[#allocation5 + $0x128] sm:$0xff]
      %v1411 = vld [vmem:[#allocation5 + $0x130] sm:$0xff]
      %v1412 = vld [vmem:[#allocation5 + $0x138] sm:$0xff]
      %v1413 = vld [vmem:[#allocation5 + $0x140] sm:$0xff]
      %v1414 = vld [vmem:[#allocation5 + $0x148] sm:$0xff]
      %v1415 = vld [vmem:[#allocation5 + $0x150] sm:$0xff]
      %v1416 = vld [vmem:[#allocation5 + $0x158] sm:$0xff]
      %v1417 = vld [vmem:[#allocation5 + $0x160] sm:$0xff]
      %v1418 = vld [vmem:[#allocation5 + $0x168] sm:$0xff]
      %v1419 = vld [vmem:[#allocation5 + $0x170] sm:$0xff]
      %v1420 = vld [vmem:[#allocation5 + $0x178] sm:$0xff]
      %v1421 = vld [vmem:[#allocation5 + $0x180] sm:$0xff]
      %v1422 = vld [vmem:[#allocation5 + $0x188] sm:$0xff]
      %v1423 = vld [vmem:[#allocation5 + $0x190] sm:$0xff]
      %v1424 = vld [vmem:[#allocation5 + $0x198] sm:$0xff]
      %v1425 = vld [vmem:[#allocation5 + $0x1a0] sm:$0xff]
      %v1426 = vld [vmem:[#allocation5 + $0x1a8] sm:$0xff]
      %v1427 = vld [vmem:[#allocation5 + $0x1b0] sm:$0xff]
      %v1428 = vld [vmem:[#allocation5 + $0x1b8] sm:$0xff]
      %v1429 = vld [vmem:[#allocation5 + $0x1c0] sm:$0xff]
      %v1430 = vld [vmem:[#allocation5 + $0x1c8] sm:$0xff]
      %v1431 = vld [vmem:[#allocation5 + $0x1d0] sm:$0xff]
      %v1432 = vld [vmem:[#allocation5 + $0x1d8] sm:$0xff]
      %v1433 = vld [vmem:[#allocation5 + $0x1e0] sm:$0xff]
      %v1434 = vld [vmem:[#allocation5 + $0x1e8] sm:$0xff]
      %v1435 = vld [vmem:[#allocation5 + $0x1f0] sm:$0xff]
      %v1436 = vld [vmem:[#allocation5 + $0x1f8] sm:$0xff]
      %v1437 = vld [vmem:[#allocation5 + $0x200] sm:$0xff]
      %v1438 = vld [vmem:[#allocation5 + $0x208] sm:$0xff]
      %v1439 = vld [vmem:[#allocation5 + $0x210] sm:$0xff]
      %v1440 = vld [vmem:[#allocation5 + $0x218] sm:$0xff]
      %v1441 = vld [vmem:[#allocation5 + $0x220] sm:$0xff]
      %v1442 = vld [vmem:[#allocation5 + $0x228] sm:$0xff]
      %v1443 = vld [vmem:[#allocation5 + $0x230] sm:$0xff]
      %v1444 = vld [vmem:[#allocation5 + $0x238] sm:$0xff]
      %vm1445 = vcmask 261120
      %v1447 = vsel %vm1445, %v1372, 0
      %1449 = vmatprep.subr.mxu0 %v1374
      %1450 = vmatpush1.msra.mxu0 %v1373
      %1451 = vmatprep.subr.mxu0 %v1376
      %1452 = vmatpush1.msra.mxu0 %v1375
      %1453 = vmatprep.subr.mxu0 %v1378
      %1454 = vmatpush1.msra.mxu0 %v1377
      %1455 = vmatprep.subr.mxu0 %v1380
      %1456 = vmatpush1.msra.mxu0 %v1379
      %1457 = vmatprep.subr.mxu0 %v1382
      %1458 = vmatpush1.msra.mxu0 %v1381
      %1459 = vmatprep.subr.mxu0 %v1384
      %1460 = vmatpush1.msra.mxu0 %v1383
      %1461 = vmatprep.subr.mxu0 %v1386
      %1462 = vmatpush1.msra.mxu0 %v1385
      %1463 = vmatprep.subr.mxu0 %v1388
      %1464 = vmatpush1.msra.mxu0 %v1387
      %1465 = vmatprep.subr.mxu0 %v1390
      %1466 = vmatpush1.msra.mxu0 %v1389
      %1467 = vmatprep.subr.mxu0 %v1392
      %1468 = vmatpush1.msra.mxu0 %v1391
      %1469 = vmatprep.subr.mxu0 %v1394
      %1470 = vmatpush1.msra.mxu0 %v1393
      %1471 = vmatprep.subr.mxu0 %v1396
      %1472 = vmatpush1.msra.mxu0 %v1395
      %1473 = vmatprep.subr.mxu0 %v1398
      %1474 = vmatpush1.msra.mxu0 %v1397
      %1475 = vmatprep.subr.mxu0 %v1400
      %1476 = vmatpush1.msra.mxu0 %v1399
      %1477 = vmatprep.subr.mxu0 %v1402
      %1478 = vmatpush1.msra.mxu0 %v1401
      %1479 = vmatprep.subr.mxu0 %v1404
      %1480 = vmatpush1.msra.mxu0 %v1403
      %1481 = vmatprep.subr.mxu0 %v1406
      %1482 = vmatpush1.msra.mxu0 %v1405
      %1483 = vmatprep.subr.mxu0 %v1408
      %1484 = vmatpush1.msra.mxu0 %v1407
      %1485 = vmatprep.subr.mxu0 %v1410
      %1486 = vmatpush1.msra.mxu0 %v1409
      %1487 = vmatprep.subr.mxu0 %v1412
      %1488 = vmatpush1.msra.mxu0 %v1411
      %1489 = vmatprep.subr.mxu0 %v1414
      %1490 = vmatpush1.msra.mxu0 %v1413
      %1491 = vmatprep.subr.mxu0 %v1416
      %1492 = vmatpush1.msra.mxu0 %v1415
      %1493 = vmatprep.subr.mxu0 %v1418
      %1494 = vmatpush1.msra.mxu0 %v1417
      %1495 = vmatprep.subr.mxu0 %v1420
      %1496 = vmatpush1.msra.mxu0 %v1419
      %1497 = vmatprep.subr.mxu0 %v1422
      %1498 = vmatpush1.msra.mxu0 %v1421
      %1499 = vmatprep.subr.mxu0 %v1424
      %1500 = vmatpush1.msra.mxu0 %v1423
      %1501 = vmatprep.subr.mxu0 %v1426
      %1502 = vmatpush1.msra.mxu0 %v1425
      %1503 = vmatprep.subr.mxu0 %v1428
      %1504 = vmatpush1.msra.mxu0 %v1427
      %1505 = vmatprep.subr.mxu0 %v1430
      %1506 = vmatpush1.msra.mxu0 %v1429
      %1507 = vmatprep.subr.mxu0 %v1432
      %1508 = vmatpush1.msra.mxu0 %v1431
      %1509 = vmatprep.subr.mxu0 %v1434
      %1510 = vmatpush1.msra.mxu0 %v1433
      %1511 = vmatprep.subr.mxu0 %v1436
      %1512 = vmatpush1.msra.mxu0 %v1435
      %1513 = vmatprep.mubr.f32.mxu0 %v1371
      %1514 = vmatmul.mubr.f32.gmra.mrb[0].mxu0 %v1370
      %v1515 = vpop.f32.mrb[0].mxu0
      %v1516 = vadd.f32 0.0, %v1515
      %v1517 = vpop.f32.mrb[0].mxu0
      %v1518 = vadd.f32 0.0, %v1517
      %1519 = vdwg.mxu0
      %1520 = vmatprep.subr.mxu0 %v1438
      %1521 = vmatpush1.msra.mxu0 %v1437
      %1522 = vmatprep.subr.mxu0 %v1440
      %1523 = vmatpush1.msra.mxu0 %v1439
      %1524 = vmatprep.subr.mxu0 %v1442
      %1525 = vmatpush1.msra.mxu0 %v1441
      %1526 = vmatprep.subr.mxu0 %v1444
      %1527 = vmatpush1.msra.mxu0 %v1443
      %1528 = vmatprep.subr.mxu0 0.0
      %1529 = vmatpush1.msra.mxu0 0.0
      %1530 = vmatprep.subr.mxu0 0.0
      %1531 = vmatpush1.msra.mxu0 0.0
      %1532 = vmatprep.subr.mxu0 0.0
      %1533 = vmatpush1.msra.mxu0 0.0
      %1534 = vmatprep.subr.mxu0 0.0
      %1535 = vmatpush1.msra.mxu0 0.0
      %1536 = vmatprep.subr.mxu0 0.0
      %1537 = vmatpush1.msra.mxu0 0.0
      %1538 = vmatprep.subr.mxu0 0.0
      %1539 = vmatpush1.msra.mxu0 0.0
      %1540 = vmatprep.subr.mxu0 0.0
      %1541 = vmatpush1.msra.mxu0 0.0
      %1542 = vmatprep.subr.mxu0 0.0
      %1543 = vmatpush1.msra.mxu0 0.0
      %1544 = vmatprep.subr.mxu0 0.0
      %1545 = vmatpush1.msra.mxu0 0.0
      %1546 = vmatprep.subr.mxu0 0.0
      %1547 = vmatpush1.msra.mxu0 0.0
      %1548 = vmatprep.subr.mxu0 0.0
      %1549 = vmatpush1.msra.mxu0 0.0
      %1550 = vmatprep.subr.mxu0 0.0
      %1551 = vmatpush1.msra.mxu0 0.0
      %1552 = vmatprep.subr.mxu0 0.0
      %1553 = vmatpush1.msra.mxu0 0.0
      %1554 = vmatprep.subr.mxu0 0.0
      %1555 = vmatpush1.msra.mxu0 0.0
      %1556 = vmatprep.subr.mxu0 0.0
      %1557 = vmatpush1.msra.mxu0 0.0
      %1558 = vmatprep.subr.mxu0 0.0
      %1559 = vmatpush1.msra.mxu0 0.0
      %1560 = vmatprep.subr.mxu0 0.0
      %1561 = vmatpush1.msra.mxu0 0.0
      %1562 = vmatprep.subr.mxu0 0.0
      %1563 = vmatpush1.msra.mxu0 0.0
      %1564 = vmatprep.subr.mxu0 0.0
      %1565 = vmatpush1.msra.mxu0 0.0
      %1566 = vmatprep.subr.mxu0 0.0
      %1567 = vmatpush1.msra.mxu0 0.0
      %1568 = vmatprep.subr.mxu0 0.0
      %1569 = vmatpush1.msra.mxu0 0.0
      %1570 = vmatprep.subr.mxu0 0.0
      %1571 = vmatpush1.msra.mxu0 0.0
      %1572 = vmatprep.subr.mxu0 0.0
      %1573 = vmatpush1.msra.mxu0 0.0
      %1574 = vmatprep.subr.mxu0 0.0
      %1575 = vmatpush1.msra.mxu0 0.0
      %1576 = vmatprep.subr.mxu0 0.0
      %1577 = vmatpush1.msra.mxu0 0.0
      %1578 = vmatprep.subr.mxu0 0.0
      %1579 = vmatpush1.msra.mxu0 0.0
      %1580 = vmatprep.subr.mxu0 0.0
      %1581 = vmatpush1.msra.mxu0 0.0
      %1582 = vmatprep.subr.mxu0 0.0
      %1583 = vmatpush1.msra.mxu0 0.0
      %1584 = vmatprep.mubr.f32.mxu0 0.0
      %1585 = vmatmul.mubr.f32.gmra.mrb[0].mxu0 %v1447
      %v1586 = vpop.f32.mrb[0].mxu0
      %v1587 = vadd.f32 %v1516, %v1586
      %v1588 = vpop.f32.mrb[0].mxu0
      %v1589 = vadd.f32 %v1518, %v1588
      %1590 = vdwg.mxu0
      %v1591 = vld [vmem:[%s5] sm:$0x7]
      %1593 = vset.pattern.permute.xlu0 0
      %1594 = vperm.xlu0 %1593, %v1591
      %v1595 = vpop.permute.xlu0 %1594
      %v1597 = vadd.f32 %v1587, %v1595
      %v1598 = vadd.f32 %v1589, %v1595
      %v1599 = vsub.f32 0.0, %v1597
      %v1600 = vsub.f32 0.0, %v1598
      %v1601 = vmul.f32 %v1599, 1.442695
      %v1602 = vpow.pop %v1601
      %v1603 = vmul.f32 %v1600, 1.442695
      %v1604 = vpow.pop %v1603
      %v1605 = vadd.f32 %v1602, 1.0
      %v1606 = vadd.f32 %v1604, 1.0
      %v1607 = vrcp.pop %v1605
      %v1608 = vmul.f32 1.0, %v1607
      %v1609 = vrcp.pop %v1606
      %v1610 = vmul.f32 1.0, %v1609
      %v1613 = vcombine.low %v1608, %v1610
      %1615 = vst [vmem:[%s268] sm:$0x77] %v1613
      %p1616 = scmp.lt.s32.totalorder %s17, 1
      %s1617 = scalar_select %p1616, %s17, 1
      %s1618 = smul.addr %s1617, 2
      %s1619 = smul.addr %s1618, 4
      %s1620 = scalar_lea.vmem %s6, %s1619
      // Predicated region
      $region45: #{side_view_feature_extractor.1} parent=43 // pred_check
        %p1621 = pneg %p171
      $region46: #{side_view_feature_extractor.1} parent=43 // pred_check_branch
        %1623 = sbr.rel (%p1621) target = $region48
      $region47: #{side_view_feature_extractor.1} parent=43 // pred_region
        _
      $region48: #{side_view_feature_extractor.1} parent=43 // pred_fallthru
        _
    $region44: #{side_view_feature_extractor.1} parent=5 // pred_fallthru
      _
    %p1624 = scmp.le.s32.totalorder 2, %s12
    // Predicated region
    $region49: #{side_view_feature_extractor.1} parent=5 // pred_check
      %p1625 = pneg %p1624
    $region50: #{side_view_feature_extractor.1} parent=5 // pred_check_branch
      %1627 = sbr.rel (%p1625) target = $region52
    $region51: #{side_view_feature_extractor.1} parent=5 // pred_region
      %s1628 = ssub.s32 %s12, 2
      // Predicated region
      $region53: #{side_view_feature_extractor.1} parent=51 // pred_check
        %p1629 = pneg %p177
      $region54: #{side_view_feature_extractor.1} parent=51 // pred_check_branch
        %1631 = sbr.rel (%p1629) target = $region56
      $region55: #{side_view_feature_extractor.1} parent=51 // pred_region
        %p1632 = scmp.lt.s32.totalorder %s18, 1
        %s1633 = scalar_select %p1632, %s18, 1
        %s1634 = smul.addr %s1633, 2
        %s1635 = smul.addr %s1634, 4
        %s1636 = scalar_lea.vmem %s6, %s1635
      $region56: #{side_view_feature_extractor.1} parent=51 // pred_fallthru
        _
    $region52: #{side_view_feature_extractor.1} parent=5 // pred_fallthru
      _
  $region6: #{side_view_feature_extractor.1} parent=0 // loop_footer
    %s16 = sadd.s32 1, %s12
  $region7: #{side_view_feature_extractor.1} parent=0 // loop_footer_branch
    %11 = sbr.rel target = $region3
  $region8: #{side_view_feature_extractor.1} parent=0 // loop_exit
    _

</llo_original>
